<compile_context>
chip_gen: v7x
topology: tpu7x:2x2x1
jax: 0.10.0
libtpu: 0.0.40
codegen_flags: <defaults>
</compile_context>

<pallas_src>
import numpy as np
import jax
import jax.numpy as jnp
from jax import lax
from jax.experimental import pallas as pl
from jax.experimental.pallas import tpu as pltpu


def _round_up(x, m):
    return (x + m - 1) // m * m


def _pad2(x, r, c):
    """Zero-pad the last two dims of x up to (r, c)."""
    widths = [(0, 0)] * (x.ndim - 2) + [(0, r - x.shape[-2]), (0, c - x.shape[-1])]
    return jnp.pad(x, widths)


def _pick_time_chunk(T, cap=32):
    c = min(T, cap)
    while T % c:
        c -= 1
    return c


def _rnn_kernel(emb_ref, h0_ref, wih0_ref, b0_ref, whh0_ref,
                wcat_ref, brest_ref, wfc_ref, bfc_ref,
                out_ref, hs_ref, x0_ref):
    """One time-chunk of the multi-layer tanh RNN recurrence + final Linear.

    emb_ref  : (Tt, Bp, Ep)   time-major embedding chunk (streamed over grid)
    h0_ref   : (L, Bp, Hp)    initial hidden state
    wih0_ref : (Ep, Hp)       layer-0 input weights, pre-transposed
    b0_ref   : (1, Hp)        layer-0 bias (b_ih + b_hh)
    whh0_ref : (Hp, Hp)       layer-0 hidden weights, pre-transposed
    wcat_ref : (Lr, 2*Hp, Hp) layers>0 fused [w_ih^T ; w_hh^T]
    brest_ref: (Lr, 1, Hp)    layers>0 bias (b_ih + b_hh)
    wfc_ref  : (Hp, Cp)       fc weight, pre-transposed
    bfc_ref  : (1, Cp)        fc bias
    out_ref  : (Bp, Cp)       logits (lane-dense slab; sliced outside)
    hs_ref   : (L, Bp, Hp)    VMEM scratch: hidden state carried across chunks
    x0_ref   : (Tt, Bp, Hp)   VMEM scratch: hoisted layer-0 input projection
    """
    Tt, Bp, Ep = emb_ref.shape
    L, _, Hp = h0_ref.shape

    # Initialize the hidden-state carry on the first chunk.
    @pl.when(pl.program_id(0) == 0)
    def _():
        hs_ref[...] = h0_ref[...].astype(jnp.float32)

    # Hoisted layer-0 input projection: ONE (Tt*Bp, Ep) x (Ep, Hp) matmul for
    # the whole chunk, bias folded in once. The serial loop below only carries
    # the unavoidable recurrent matmuls.
    x_flat = emb_ref[...].astype(jnp.float32).reshape(Tt * Bp, Ep)
    x0 = jnp.dot(x_flat, wih0_ref[...], preferred_element_type=jnp.float32)
    x0_ref[...] = (x0 + b0_ref[...]).reshape(Tt, Bp, Hp)

    def step(t, hs):
        # layer 0: precomputed input projection + recurrent matmul
        h_new = jnp.tanh(
            x0_ref[t]
            + jnp.dot(hs[0], whh0_ref[...], preferred_element_type=jnp.float32))
        new_hs = [h_new]
        inp = h_new
        for l in range(1, L):                      # L small & static -> unrolled
            cat = jnp.concatenate([inp, hs[l]], axis=-1)          # (Bp, 2*Hp)
            h_new = jnp.tanh(
                jnp.dot(cat, wcat_ref[l - 1], preferred_element_type=jnp.float32)
                + brest_ref[l - 1])
            new_hs.append(h_new)
            inp = h_new
        return tuple(new_hs)

    hs0 = tuple(hs_ref[l] for l in range(L))
    hs_final = lax.fori_loop(0, Tt, step, hs0, unroll=True)
    for l in range(L):
        hs_ref[l] = hs_final[l]

    # rnn_output[:, -1, :] of the top layer == final hidden of the top layer.
    # Lane-dense (Bp, Cp) slab; the value written on the last chunk is the one
    # that lands in HBM (constant out block index -> resident accumulator).
    out_ref[...] = (jnp.dot(hs_final[L - 1], wfc_ref[...],
                            preferred_element_type=jnp.float32)
                    + bfc_ref[...])


def sentiment_rnn_forward(token_ids, hidden0, params, *, time_chunk_cap=32):
    """token_ids: (B, T) int32, hidden0: (L, B, H) float32 -> (B, C) float32."""
    B, T = token_ids.shape
    L, _, H = hidden0.shape
    E = params["embedding"].shape[1]
    C = params["w_fc"].shape[0]

    Bp = _round_up(max(B, 8), 8)        # sublane width
    Ep = _round_up(E, 128)              # lane width
    Hp = _round_up(H, 128)
    Cp = _round_up(C, 128)
    Tt = _pick_time_chunk(T, time_chunk_cap)
    f32 = jnp.float32

    # ---- layout plumbing (once per call, outside the hot recurrence) -------
    # TODO(synk): the GloVe embedding gather (1.19M-row table) stays an XLA
    # gather from HBM; a Pallas DMA-gather kernel adds nothing here.
    emb = params["embedding"][token_ids].astype(f32)            # (B, T, E)
    emb_t = jnp.transpose(emb, (1, 0, 2))                       # (T, B, E)
    emb_t = _pad2(emb_t, Bp, Ep)                                # (T, Bp, Ep)

    h0 = _pad2(hidden0.astype(f32), Bp, Hp)                     # (L, Bp, Hp)

    wih0_t = _pad2(params["w_ih0"].T.astype(f32), Ep, Hp)       # (Ep, Hp)
    whh0_t = _pad2(params["w_hh"][0].T.astype(f32), Hp, Hp)     # (Hp, Hp)
    b0 = _pad2((params["b_ih"][0] + params["b_hh"][0]).astype(f32), 1, Hp)

    Lr = max(L - 1, 1)
    wcat = jnp.zeros((Lr, 2 * Hp, Hp), f32)
    brest = jnp.zeros((Lr, 1, Hp), f32)
    for l in range(1, L):
        wih_t = _pad2(params["w_ih_rest"][l - 1].T.astype(f32), Hp, Hp)
        whh_t = _pad2(params["w_hh"][l].T.astype(f32), Hp, Hp)
        wcat = wcat.at[l - 1].set(jnp.concatenate([wih_t, whh_t], axis=0))
        brest = brest.at[l - 1].set(
            _pad2((params["b_ih"][l] + params["b_hh"][l]).astype(f32), 1, Hp))

    wfc_t = _pad2(params["w_fc"].T.astype(f32), Hp, Cp)         # (Hp, Cp)
    bfc = _pad2(params["b_fc"].astype(f32), 1, Cp)              # (1, Cp)

    num_chunks = T // Tt

    out_p = pl.pallas_call(
        _rnn_kernel,
        out_shape=jax.ShapeDtypeStruct((Bp, Cp), f32),
        grid_spec=pltpu.PrefetchScalarGridSpec(
            num_scalar_prefetch=0,
            grid=(num_chunks,),
            in_specs=[
                pl.BlockSpec((Tt, Bp, Ep), lambda t: (t, 0, 0)),      # emb chunk
                pl.BlockSpec((L, Bp, Hp), lambda t: (0, 0, 0)),       # h0
                pl.BlockSpec((Ep, Hp), lambda t: (0, 0)),             # wih0_t
                pl.BlockSpec((1, Hp), lambda t: (0, 0)),              # b0
                pl.BlockSpec((Hp, Hp), lambda t: (0, 0)),             # whh0_t
                pl.BlockSpec((Lr, 2 * Hp, Hp), lambda t: (0, 0, 0)),  # wcat
                pl.BlockSpec((Lr, 1, Hp), lambda t: (0, 0, 0)),       # brest
                pl.BlockSpec((Hp, Cp), lambda t: (0, 0)),             # wfc_t
                pl.BlockSpec((1, Cp), lambda t: (0, 0)),              # bfc
            ],
            out_specs=pl.BlockSpec((Bp, Cp), lambda t: (0, 0)),
            scratch_shapes=[
                pltpu.VMEM((L, Bp, Hp), f32),    # hidden carry across chunks
                pltpu.VMEM((Tt, Bp, Hp), f32),   # hoisted layer-0 projection
            ]),
        compiler_params=pltpu.CompilerParams(
            dimension_semantics=("arbitrary",)),   # serial recurrence over time
    )(emb_t, h0, wih0_t, b0, whh0_t, wcat, brest, wfc_t, bfc)

    return out_p[:B, :C]


def make_params(key, vocab_size, embedding_dim, hidden_dim, n_layers, num_class):
    ks = jax.random.split(key, 9)
    s = 1.0 / np.sqrt(hidden_dim)
    u = lambda k, shape, scale: jax.random.uniform(k, shape, jnp.float32, -scale, scale)
    return {
        "embedding": u(ks[0], (vocab_size, embedding_dim), 0.5),
        "w_ih0": u(ks[1], (hidden_dim, embedding_dim), s),
        "w_ih_rest": u(ks[2], (max(n_layers - 1, 1), hidden_dim, hidden_dim), s),
        "w_hh": u(ks[3], (n_layers, hidden_dim, hidden_dim), s),
        "b_ih": u(ks[4], (n_layers, 1, hidden_dim), s),
        "b_hh": u(ks[5], (n_layers, 1, hidden_dim), s),
        "w_fc": u(ks[6], (num_class, hidden_dim), s),
        "b_fc": u(ks[7], (1, num_class), s),
    }


def reference_forward(token_ids, hidden0, params):
    """Pure-JAX reference mirroring torch.nn.RNN(batch_first=True) + Linear."""
    emb = params["embedding"][token_ids].astype(jnp.float32)   # (B, T, E)
    B, T, _ = emb.shape
    L = hidden0.shape[0]
    hs = [hidden0[l] for l in range(L)]
    for t in range(T):
        inp = emb[:, t, :]
        for l in range(L):
            w_ih = params["w_ih0"] if l == 0 else params["w_ih_rest"][l - 1]
            h = jnp.tanh(inp @ w_ih.T + params["b_ih"][l]
                         + hs[l] @ params["w_hh"][l].T + params["b_hh"][l])
            hs[l] = h
            inp = h
    return hs[-1] @ params["w_fc"].T + params["b_fc"]


if __name__ == "__main__":
    # Small, forward-consistent shapes (embedding_dim=100 matches the spec).
    VOCAB, E, H, L, C = 1000, 100, 32, 2, 4
    B, T = 2, 8

    key = jax.random.PRNGKey(0)
    k_params, k_tok = jax.random.split(key)
    params = make_params(k_params, VOCAB, E, H, L, C)

    token_ids = jax.random.randint(k_tok, (B, T), 0, VOCAB, dtype=jnp.int32)
    hidden0 = jnp.zeros((L, B, H), jnp.float32)     # SentimentRNN.init_hidden

    out = sentiment_rnn_forward(token_ids, hidden0, params)
    out = jax.block_until_ready(out)

    ref = reference_forward(token_ids, hidden0, params)
    np.testing.assert_allclose(np.asarray(out), np.asarray(ref), rtol=1e-5, atol=1e-5)

    print("KERNEL_OK")
</pallas_src>

<mosaic_0001>
module attributes {stable_mosaic.version = 11 : i64} {
  func.func @_rnn_kernel(%arg0: i32, %arg1: memref<8x8x128xf32, #tpu.memory_space<vmem>>, %arg2: memref<2x8x128xf32, #tpu.memory_space<vmem>>, %arg3: memref<128x128xf32, #tpu.memory_space<vmem>>, %arg4: memref<1x128xf32, #tpu.memory_space<vmem>>, %arg5: memref<128x128xf32, #tpu.memory_space<vmem>>, %arg6: memref<1x256x128xf32, #tpu.memory_space<vmem>>, %arg7: memref<1x1x128xf32, #tpu.memory_space<vmem>>, %arg8: memref<128x128xf32, #tpu.memory_space<vmem>>, %arg9: memref<1x128xf32, #tpu.memory_space<vmem>>, %arg10: memref<8x128xf32, #tpu.memory_space<vmem>>, %arg11: memref<2x8x128xf32, #tpu.memory_space<vmem>>, %arg12: memref<8x8x128xf32, #tpu.memory_space<vmem>>) attributes {dimension_semantics = [#tpu.dimension_semantics<arbitrary>], iteration_bounds = array<i64: 1>, scalar_prefetch = 0 : i64, scratch_operands = 2 : i64, tpu.core_type = #tpu.core_type<tc>, window_params = [{transform_indices = @transform_0, window_bounds = array<i64: 8, 8, 128>}, {pipeline_mode = #tpu.pipeline_mode<synchronous>, transform_indices = @transform_1, window_bounds = array<i64: 2, 8, 128>}, {pipeline_mode = #tpu.pipeline_mode<synchronous>, transform_indices = @transform_2, window_bounds = array<i64: 128, 128>}, {pipeline_mode = #tpu.pipeline_mode<synchronous>, transform_indices = @transform_3, window_bounds = array<i64: 1, 128>}, {pipeline_mode = #tpu.pipeline_mode<synchronous>, transform_indices = @transform_4, window_bounds = array<i64: 128, 128>}, {pipeline_mode = #tpu.pipeline_mode<synchronous>, transform_indices = @transform_5, window_bounds = array<i64: 1, 256, 128>}, {pipeline_mode = #tpu.pipeline_mode<synchronous>, transform_indices = @transform_6, window_bounds = array<i64: 1, 1, 128>}, {pipeline_mode = #tpu.pipeline_mode<synchronous>, transform_indices = @transform_7, window_bounds = array<i64: 128, 128>}, {pipeline_mode = #tpu.pipeline_mode<synchronous>, transform_indices = @transform_8, window_bounds = array<i64: 1, 128>}, {pipeline_mode = #tpu.pipeline_mode<synchronous>, transform_indices = @transform_9, window_bounds = array<i64: 8, 128>}]} {
    %c0_i32 = arith.constant 0 : i32
    %0 = arith.cmpi eq, %arg0, %c0_i32 : i32
    %1 = arith.extui %0 : i1 to i32
    %c0_i32_0 = arith.constant 0 : i32
    %2 = arith.cmpi ne, %1, %c0_i32_0 : i32
    scf.if %2 {
      %c0_125 = arith.constant 0 : index
      %c0_126 = arith.constant 0 : index
      %c0_127 = arith.constant 0 : index
      %156 = vector.load %arg2[%c0_125, %c0_126, %c0_127] : memref<2x8x128xf32, #tpu.memory_space<vmem>>, vector<2x8x128xf32>
      %c0_128 = arith.constant 0 : index
      %c0_129 = arith.constant 0 : index
      %c0_130 = arith.constant 0 : index
      %157 = vector.load %arg11[%c0_128, %c0_129, %c0_130] : memref<2x8x128xf32, #tpu.memory_space<vmem>>, vector<2x8x128xf32>
      tpu.vector_store %arg11[%c0_128, %c0_129, %c0_130], %156 {strides = array<i32>} : memref<2x8x128xf32, #tpu.memory_space<vmem>>, vector<2x8x128xf32>,
    } else {
    }
    %c0 = arith.constant 0 : index
    %c0_1 = arith.constant 0 : index
    %c0_2 = arith.constant 0 : index
    %3 = vector.load %arg1[%c0, %c0_1, %c0_2] : memref<8x8x128xf32, #tpu.memory_space<vmem>>, vector<8x8x128xf32>
    %4 = vector.shape_cast %3 : vector<8x8x128xf32> to vector<64x128xf32>
    %c0_3 = arith.constant 0 : index
    %c0_4 = arith.constant 0 : index
    %5 = vector.load %arg3[%c0_3, %c0_4] : memref<128x128xf32, #tpu.memory_space<vmem>>, vector<128x128xf32>
    %cst = arith.constant dense<0.000000e+00> : vector<64x128xf32>
    %6 = tpu.matmul %4, %5, %cst {dimension_numbers = #tpu.dot_dimension_numbers<[1], [0], [0], [1], [0, 0, 1, 1], [], []>} : vector<64x128xf32>, vector<128x128xf32>, vector<64x128xf32> -> vector<64x128xf32>
    %c0_5 = arith.constant 0 : index
    %c0_6 = arith.constant 0 : index
    %7 = vector.load %arg4[%c0_5, %c0_6] : memref<1x128xf32, #tpu.memory_space<vmem>>, vector<1x128xf32>
    %8 = vector.broadcast %7 : vector<1x128xf32> to vector<64x128xf32>
    %9 = arith.addf %6, %8 : vector<64x128xf32>
    %10 = vector.shape_cast %9 : vector<64x128xf32> to vector<8x8x128xf32>
    %c0_7 = arith.constant 0 : index
    %c0_8 = arith.constant 0 : index
    %c0_9 = arith.constant 0 : index
    %11 = vector.load %arg12[%c0_7, %c0_8, %c0_9] : memref<8x8x128xf32, #tpu.memory_space<vmem>>, vector<8x8x128xf32>
    tpu.vector_store %arg12[%c0_7, %c0_8, %c0_9], %10 {strides = array<i32>} : memref<8x8x128xf32, #tpu.memory_space<vmem>>, vector<8x8x128xf32>,
    %c0_10 = arith.constant 0 : index
    %c0_11 = arith.constant 0 : index
    %c0_12 = arith.constant 0 : index
    %12 = vector.load %arg11[%c0_10, %c0_11, %c0_12] : memref<2x8x128xf32, #tpu.memory_space<vmem>>, vector<1x8x128xf32>
    %13 = vector.shape_cast %12 : vector<1x8x128xf32> to vector<8x128xf32>
    %c1 = arith.constant 1 : index
    %c0_13 = arith.constant 0 : index
    %c0_14 = arith.constant 0 : index
    %14 = vector.load %arg11[%c1, %c0_13, %c0_14] : memref<2x8x128xf32, #tpu.memory_space<vmem>>, vector<1x8x128xf32>
    %15 = vector.shape_cast %14 : vector<1x8x128xf32> to vector<8x128xf32>
    %c0_i32_15 = arith.constant 0 : i32
    %16 = arith.index_cast %c0_i32_15 : i32 to index
    %c0_16 = arith.constant 0 : index
    %c0_17 = arith.constant 0 : index
    %17 = vector.load %arg12[%16, %c0_16, %c0_17] : memref<8x8x128xf32, #tpu.memory_space<vmem>>, vector<1x8x128xf32>
    %18 = vector.shape_cast %17 : vector<1x8x128xf32> to vector<8x128xf32>
    %c0_18 = arith.constant 0 : index
    %c0_19 = arith.constant 0 : index
    %19 = vector.load %arg5[%c0_18, %c0_19] : memref<128x128xf32, #tpu.memory_space<vmem>>, vector<128x128xf32>
    %cst_20 = arith.constant dense<0.000000e+00> : vector<8x128xf32>
    %20 = tpu.matmul %13, %19, %cst_20 {dimension_numbers = #tpu.dot_dimension_numbers<[1], [0], [0], [1], [0, 0, 1, 1], [], []>} : vector<8x128xf32>, vector<128x128xf32>, vector<8x128xf32> -> vector<8x128xf32>
    %21 = arith.addf %18, %20 : vector<8x128xf32>
    %22 = math.tanh %21 : vector<8x128xf32>
    %23 = tpu.concatenate %22, %15 in 1 : vector<8x128xf32>, vector<8x128xf32> -> vector<8x256xf32>
    %c0_21 = arith.constant 0 : index
    %c0_22 = arith.constant 0 : index
    %c0_23 = arith.constant 0 : index
    %24 = vector.load %arg6[%c0_21, %c0_22, %c0_23] : memref<1x256x128xf32, #tpu.memory_space<vmem>>, vector<1x256x128xf32>
    %25 = vector.shape_cast %24 : vector<1x256x128xf32> to vector<256x128xf32>
    %cst_24 = arith.constant dense<0.000000e+00> : vector<8x128xf32>
    %26 = tpu.matmul %23, %25, %cst_24 {dimension_numbers = #tpu.dot_dimension_numbers<[1], [0], [0], [1], [0, 0, 1, 1], [], []>} : vector<8x256xf32>, vector<256x128xf32>, vector<8x128xf32> -> vector<8x128xf32>
    %c0_25 = arith.constant 0 : index
    %c0_26 = arith.constant 0 : index
    %c0_27 = arith.constant 0 : index
    %27 = vector.load %arg7[%c0_25, %c0_26, %c0_27] : memref<1x1x128xf32, #tpu.memory_space<vmem>>, vector<1x1x128xf32>
    %28 = vector.shape_cast %27 : vector<1x1x128xf32> to vector<1x128xf32>
    %29 = vector.broadcast %28 : vector<1x128xf32> to vector<8x128xf32>
    %30 = arith.addf %26, %29 : vector<8x128xf32>
    %31 = math.tanh %30 : vector<8x128xf32>
    %c1_i32 = arith.constant 1 : i32
    %32 = arith.index_cast %c1_i32 : i32 to index
    %c0_28 = arith.constant 0 : index
    %c0_29 = arith.constant 0 : index
    %33 = vector.load %arg12[%32, %c0_28, %c0_29] : memref<8x8x128xf32, #tpu.memory_space<vmem>>, vector<1x8x128xf32>
    %34 = vector.shape_cast %33 : vector<1x8x128xf32> to vector<8x128xf32>
    %c0_30 = arith.constant 0 : index
    %c0_31 = arith.constant 0 : index
    %35 = vector.load %arg5[%c0_30, %c0_31] : memref<128x128xf32, #tpu.memory_space<vmem>>, vector<128x128xf32>
    %cst_32 = arith.constant dense<0.000000e+00> : vector<8x128xf32>
    %36 = tpu.matmul %22, %35, %cst_32 {dimension_numbers = #tpu.dot_dimension_numbers<[1], [0], [0], [1], [0, 0, 1, 1], [], []>} : vector<8x128xf32>, vector<128x128xf32>, vector<8x128xf32> -> vector<8x128xf32>
    %37 = arith.addf %34, %36 : vector<8x128xf32>
    %38 = math.tanh %37 : vector<8x128xf32>
    %39 = tpu.concatenate %38, %31 in 1 : vector<8x128xf32>, vector<8x128xf32> -> vector<8x256xf32>
    %c0_33 = arith.constant 0 : index
    %c0_34 = arith.constant 0 : index
    %c0_35 = arith.constant 0 : index
    %40 = vector.load %arg6[%c0_33, %c0_34, %c0_35] : memref<1x256x128xf32, #tpu.memory_space<vmem>>, vector<1x256x128xf32>
    %41 = vector.shape_cast %40 : vector<1x256x128xf32> to vector<256x128xf32>
    %cst_36 = arith.constant dense<0.000000e+00> : vector<8x128xf32>
    %42 = tpu.matmul %39, %41, %cst_36 {dimension_numbers = #tpu.dot_dimension_numbers<[1], [0], [0], [1], [0, 0, 1, 1], [], []>} : vector<8x256xf32>, vector<256x128xf32>, vector<8x128xf32> -> vector<8x128xf32>
    %c0_37 = arith.constant 0 : index
    %c0_38 = arith.constant 0 : index
    %c0_39 = arith.constant 0 : index
    %43 = vector.load %arg7[%c0_37, %c0_38, %c0_39] : memref<1x1x128xf32, #tpu.memory_space<vmem>>, vector<1x1x128xf32>
    %44 = vector.shape_cast %43 : vector<1x1x128xf32> to vector<1x128xf32>
    %45 = vector.broadcast %44 : vector<1x128xf32> to vector<8x128xf32>
    %46 = arith.addf %42, %45 : vector<8x128xf32>
    %47 = math.tanh %46 : vector<8x128xf32>
    %c2_i32 = arith.constant 2 : i32
    %48 = arith.index_cast %c2_i32 : i32 to index
    %c0_40 = arith.constant 0 : index
    %c0_41 = arith.constant 0 : index
    %49 = vector.load %arg12[%48, %c0_40, %c0_41] : memref<8x8x128xf32, #tpu.memory_space<vmem>>, vector<1x8x128xf32>
    %50 = vector.shape_cast %49 : vector<1x8x128xf32> to vector<8x128xf32>
    %c0_42 = arith.constant 0 : index
    %c0_43 = arith.constant 0 : index
    %51 = vector.load %arg5[%c0_42, %c0_43] : memref<128x128xf32, #tpu.memory_space<vmem>>, vector<128x128xf32>
    %cst_44 = arith.constant dense<0.000000e+00> : vector<8x128xf32>
    %52 = tpu.matmul %38, %51, %cst_44 {dimension_numbers = #tpu.dot_dimension_numbers<[1], [0], [0], [1], [0, 0, 1, 1], [], []>} : vector<8x128xf32>, vector<128x128xf32>, vector<8x128xf32> -> vector<8x128xf32>
    %53 = arith.addf %50, %52 : vector<8x128xf32>
    %54 = math.tanh %53 : vector<8x128xf32>
    %55 = tpu.concatenate %54, %47 in 1 : vector<8x128xf32>, vector<8x128xf32> -> vector<8x256xf32>
    %c0_45 = arith.constant 0 : index
    %c0_46 = arith.constant 0 : index
    %c0_47 = arith.constant 0 : index
    %56 = vector.load %arg6[%c0_45, %c0_46, %c0_47] : memref<1x256x128xf32, #tpu.memory_space<vmem>>, vector<1x256x128xf32>
    %57 = vector.shape_cast %56 : vector<1x256x128xf32> to vector<256x128xf32>
    %cst_48 = arith.constant dense<0.000000e+00> : vector<8x128xf32>
    %58 = tpu.matmul %55, %57, %cst_48 {dimension_numbers = #tpu.dot_dimension_numbers<[1], [0], [0], [1], [0, 0, 1, 1], [], []>} : vector<8x256xf32>, vector<256x128xf32>, vector<8x128xf32> -> vector<8x128xf32>
    %c0_49 = arith.constant 0 : index
    %c0_50 = arith.constant 0 : index
    %c0_51 = arith.constant 0 : index
    %59 = vector.load %arg7[%c0_49, %c0_50, %c0_51] : memref<1x1x128xf32, #tpu.memory_space<vmem>>, vector<1x1x128xf32>
    %60 = vector.shape_cast %59 : vector<1x1x128xf32> to vector<1x128xf32>
    %61 = vector.broadcast %60 : vector<1x128xf32> to vector<8x128xf32>
    %62 = arith.addf %58, %61 : vector<8x128xf32>
    %63 = math.tanh %62 : vector<8x128xf32>
    %c3_i32 = arith.constant 3 : i32
    %64 = arith.index_cast %c3_i32 : i32 to index
    %c0_52 = arith.constant 0 : index
    %c0_53 = arith.constant 0 : index
    %65 = vector.load %arg12[%64, %c0_52, %c0_53] : memref<8x8x128xf32, #tpu.memory_space<vmem>>, vector<1x8x128xf32>
    %66 = vector.shape_cast %65 : vector<1x8x128xf32> to vector<8x128xf32>
    %c0_54 = arith.constant 0 : index
    %c0_55 = arith.constant 0 : index
    %67 = vector.load %arg5[%c0_54, %c0_55] : memref<128x128xf32, #tpu.memory_space<vmem>>, vector<128x128xf32>
    %cst_56 = arith.constant dense<0.000000e+00> : vector<8x128xf32>
    %68 = tpu.matmul %54, %67, %cst_56 {dimension_numbers = #tpu.dot_dimension_numbers<[1], [0], [0], [1], [0, 0, 1, 1], [], []>} : vector<8x128xf32>, vector<128x128xf32>, vector<8x128xf32> -> vector<8x128xf32>
    %69 = arith.addf %66, %68 : vector<8x128xf32>
    %70 = math.tanh %69 : vector<8x128xf32>
    %71 = tpu.concatenate %70, %63 in 1 : vector<8x128xf32>, vector<8x128xf32> -> vector<8x256xf32>
    %c0_57 = arith.constant 0 : index
    %c0_58 = arith.constant 0 : index
    %c0_59 = arith.constant 0 : index
    %72 = vector.load %arg6[%c0_57, %c0_58, %c0_59] : memref<1x256x128xf32, #tpu.memory_space<vmem>>, vector<1x256x128xf32>
    %73 = vector.shape_cast %72 : vector<1x256x128xf32> to vector<256x128xf32>
    %cst_60 = arith.constant dense<0.000000e+00> : vector<8x128xf32>
    %74 = tpu.matmul %71, %73, %cst_60 {dimension_numbers = #tpu.dot_dimension_numbers<[1], [0], [0], [1], [0, 0, 1, 1], [], []>} : vector<8x256xf32>, vector<256x128xf32>, vector<8x128xf32> -> vector<8x128xf32>
    %c0_61 = arith.constant 0 : index
    %c0_62 = arith.constant 0 : index
    %c0_63 = arith.constant 0 : index
    %75 = vector.load %arg7[%c0_61, %c0_62, %c0_63] : memref<1x1x128xf32, #tpu.memory_space<vmem>>, vector<1x1x128xf32>
    %76 = vector.shape_cast %75 : vector<1x1x128xf32> to vector<1x128xf32>
    %77 = vector.broadcast %76 : vector<1x128xf32> to vector<8x128xf32>
    %78 = arith.addf %74, %77 : vector<8x128xf32>
    %79 = math.tanh %78 : vector<8x128xf32>
    %c4_i32 = arith.constant 4 : i32
    %80 = arith.index_cast %c4_i32 : i32 to index
    %c0_64 = arith.constant 0 : index
    %c0_65 = arith.constant 0 : index
    %81 = vector.load %arg12[%80, %c0_64, %c0_65] : memref<8x8x128xf32, #tpu.memory_space<vmem>>, vector<1x8x128xf32>
    %82 = vector.shape_cast %81 : vector<1x8x128xf32> to vector<8x128xf32>
    %c0_66 = arith.constant 0 : index
    %c0_67 = arith.constant 0 : index
    %83 = vector.load %arg5[%c0_66, %c0_67] : memref<128x128xf32, #tpu.memory_space<vmem>>, vector<128x128xf32>
    %cst_68 = arith.constant dense<0.000000e+00> : vector<8x128xf32>
    %84 = tpu.matmul %70, %83, %cst_68 {dimension_numbers = #tpu.dot_dimension_numbers<[1], [0], [0], [1], [0, 0, 1, 1], [], []>} : vector<8x128xf32>, vector<128x128xf32>, vector<8x128xf32> -> vector<8x128xf32>
    %85 = arith.addf %82, %84 : vector<8x128xf32>
    %86 = math.tanh %85 : vector<8x128xf32>
    %87 = tpu.concatenate %86, %79 in 1 : vector<8x128xf32>, vector<8x128xf32> -> vector<8x256xf32>
    %c0_69 = arith.constant 0 : index
    %c0_70 = arith.constant 0 : index
    %c0_71 = arith.constant 0 : index
    %88 = vector.load %arg6[%c0_69, %c0_70, %c0_71] : memref<1x256x128xf32, #tpu.memory_space<vmem>>, vector<1x256x128xf32>
    %89 = vector.shape_cast %88 : vector<1x256x128xf32> to vector<256x128xf32>
    %cst_72 = arith.constant dense<0.000000e+00> : vector<8x128xf32>
    %90 = tpu.matmul %87, %89, %cst_72 {dimension_numbers = #tpu.dot_dimension_numbers<[1], [0], [0], [1], [0, 0, 1, 1], [], []>} : vector<8x256xf32>, vector<256x128xf32>, vector<8x128xf32> -> vector<8x128xf32>
    %c0_73 = arith.constant 0 : index
    %c0_74 = arith.constant 0 : index
    %c0_75 = arith.constant 0 : index
    %91 = vector.load %arg7[%c0_73, %c0_74, %c0_75] : memref<1x1x128xf32, #tpu.memory_space<vmem>>, vector<1x1x128xf32>
    %92 = vector.shape_cast %91 : vector<1x1x128xf32> to vector<1x128xf32>
    %93 = vector.broadcast %92 : vector<1x128xf32> to vector<8x128xf32>
    %94 = arith.addf %90, %93 : vector<8x128xf32>
    %95 = math.tanh %94 : vector<8x128xf32>
    %c5_i32 = arith.constant 5 : i32
    %96 = arith.index_cast %c5_i32 : i32 to index
    %c0_76 = arith.constant 0 : index
    %c0_77 = arith.constant 0 : index
    %97 = vector.load %arg12[%96, %c0_76, %c0_77] : memref<8x8x128xf32, #tpu.memory_space<vmem>>, vector<1x8x128xf32>
    %98 = vector.shape_cast %97 : vector<1x8x128xf32> to vector<8x128xf32>
    %c0_78 = arith.constant 0 : index
    %c0_79 = arith.constant 0 : index
    %99 = vector.load %arg5[%c0_78, %c0_79] : memref<128x128xf32, #tpu.memory_space<vmem>>, vector<128x128xf32>
    %cst_80 = arith.constant dense<0.000000e+00> : vector<8x128xf32>
    %100 = tpu.matmul %86, %99, %cst_80 {dimension_numbers = #tpu.dot_dimension_numbers<[1], [0], [0], [1], [0, 0, 1, 1], [], []>} : vector<8x128xf32>, vector<128x128xf32>, vector<8x128xf32> -> vector<8x128xf32>
    %101 = arith.addf %98, %100 : vector<8x128xf32>
    %102 = math.tanh %101 : vector<8x128xf32>
    %103 = tpu.concatenate %102, %95 in 1 : vector<8x128xf32>, vector<8x128xf32> -> vector<8x256xf32>
    %c0_81 = arith.constant 0 : index
    %c0_82 = arith.constant 0 : index
    %c0_83 = arith.constant 0 : index
    %104 = vector.load %arg6[%c0_81, %c0_82, %c0_83] : memref<1x256x128xf32, #tpu.memory_space<vmem>>, vector<1x256x128xf32>
    %105 = vector.shape_cast %104 : vector<1x256x128xf32> to vector<256x128xf32>
    %cst_84 = arith.constant dense<0.000000e+00> : vector<8x128xf32>
    %106 = tpu.matmul %103, %105, %cst_84 {dimension_numbers = #tpu.dot_dimension_numbers<[1], [0], [0], [1], [0, 0, 1, 1], [], []>} : vector<8x256xf32>, vector<256x128xf32>, vector<8x128xf32> -> vector<8x128xf32>
    %c0_85 = arith.constant 0 : index
    %c0_86 = arith.constant 0 : index
    %c0_87 = arith.constant 0 : index
    %107 = vector.load %arg7[%c0_85, %c0_86, %c0_87] : memref<1x1x128xf32, #tpu.memory_space<vmem>>, vector<1x1x128xf32>
    %108 = vector.shape_cast %107 : vector<1x1x128xf32> to vector<1x128xf32>
    %109 = vector.broadcast %108 : vector<1x128xf32> to vector<8x128xf32>
    %110 = arith.addf %106, %109 : vector<8x128xf32>
    %111 = math.tanh %110 : vector<8x128xf32>
    %c6_i32 = arith.constant 6 : i32
    %112 = arith.index_cast %c6_i32 : i32 to index
    %c0_88 = arith.constant 0 : index
    %c0_89 = arith.constant 0 : index
    %113 = vector.load %arg12[%112, %c0_88, %c0_89] : memref<8x8x128xf32, #tpu.memory_space<vmem>>, vector<1x8x128xf32>
    %114 = vector.shape_cast %113 : vector<1x8x128xf32> to vector<8x128xf32>
    %c0_90 = arith.constant 0 : index
    %c0_91 = arith.constant 0 : index
    %115 = vector.load %arg5[%c0_90, %c0_91] : memref<128x128xf32, #tpu.memory_space<vmem>>, vector<128x128xf32>
    %cst_92 = arith.constant dense<0.000000e+00> : vector<8x128xf32>
    %116 = tpu.matmul %102, %115, %cst_92 {dimension_numbers = #tpu.dot_dimension_numbers<[1], [0], [0], [1], [0, 0, 1, 1], [], []>} : vector<8x128xf32>, vector<128x128xf32>, vector<8x128xf32> -> vector<8x128xf32>
    %117 = arith.addf %114, %116 : vector<8x128xf32>
    %118 = math.tanh %117 : vector<8x128xf32>
    %119 = tpu.concatenate %118, %111 in 1 : vector<8x128xf32>, vector<8x128xf32> -> vector<8x256xf32>
    %c0_93 = arith.constant 0 : index
    %c0_94 = arith.constant 0 : index
    %c0_95 = arith.constant 0 : index
    %120 = vector.load %arg6[%c0_93, %c0_94, %c0_95] : memref<1x256x128xf32, #tpu.memory_space<vmem>>, vector<1x256x128xf32>
    %121 = vector.shape_cast %120 : vector<1x256x128xf32> to vector<256x128xf32>
    %cst_96 = arith.constant dense<0.000000e+00> : vector<8x128xf32>
    %122 = tpu.matmul %119, %121, %cst_96 {dimension_numbers = #tpu.dot_dimension_numbers<[1], [0], [0], [1], [0, 0, 1, 1], [], []>} : vector<8x256xf32>, vector<256x128xf32>, vector<8x128xf32> -> vector<8x128xf32>
    %c0_97 = arith.constant 0 : index
    %c0_98 = arith.constant 0 : index
    %c0_99 = arith.constant 0 : index
    %123 = vector.load %arg7[%c0_97, %c0_98, %c0_99] : memref<1x1x128xf32, #tpu.memory_space<vmem>>, vector<1x1x128xf32>
    %124 = vector.shape_cast %123 : vector<1x1x128xf32> to vector<1x128xf32>
    %125 = vector.broadcast %124 : vector<1x128xf32> to vector<8x128xf32>
    %126 = arith.addf %122, %125 : vector<8x128xf32>
    %127 = math.tanh %126 : vector<8x128xf32>
    %c7_i32 = arith.constant 7 : i32
    %128 = arith.index_cast %c7_i32 : i32 to index
    %c0_100 = arith.constant 0 : index
    %c0_101 = arith.constant 0 : index
    %129 = vector.load %arg12[%128, %c0_100, %c0_101] : memref<8x8x128xf32, #tpu.memory_space<vmem>>, vector<1x8x128xf32>
    %130 = vector.shape_cast %129 : vector<1x8x128xf32> to vector<8x128xf32>
    %c0_102 = arith.constant 0 : index
    %c0_103 = arith.constant 0 : index
    %131 = vector.load %arg5[%c0_102, %c0_103] : memref<128x128xf32, #tpu.memory_space<vmem>>, vector<128x128xf32>
    %cst_104 = arith.constant dense<0.000000e+00> : vector<8x128xf32>
    %132 = tpu.matmul %118, %131, %cst_104 {dimension_numbers = #tpu.dot_dimension_numbers<[1], [0], [0], [1], [0, 0, 1, 1], [], []>} : vector<8x128xf32>, vector<128x128xf32>, vector<8x128xf32> -> vector<8x128xf32>
    %133 = arith.addf %130, %132 : vector<8x128xf32>
    %134 = math.tanh %133 : vector<8x128xf32>
    %135 = tpu.concatenate %134, %127 in 1 : vector<8x128xf32>, vector<8x128xf32> -> vector<8x256xf32>
    %c0_105 = arith.constant 0 : index
    %c0_106 = arith.constant 0 : index
    %c0_107 = arith.constant 0 : index
    %136 = vector.load %arg6[%c0_105, %c0_106, %c0_107] : memref<1x256x128xf32, #tpu.memory_space<vmem>>, vector<1x256x128xf32>
    %137 = vector.shape_cast %136 : vector<1x256x128xf32> to vector<256x128xf32>
    %cst_108 = arith.constant dense<0.000000e+00> : vector<8x128xf32>
    %138 = tpu.matmul %135, %137, %cst_108 {dimension_numbers = #tpu.dot_dimension_numbers<[1], [0], [0], [1], [0, 0, 1, 1], [], []>} : vector<8x256xf32>, vector<256x128xf32>, vector<8x128xf32> -> vector<8x128xf32>
    %c0_109 = arith.constant 0 : index
    %c0_110 = arith.constant 0 : index
    %c0_111 = arith.constant 0 : index
    %139 = vector.load %arg7[%c0_109, %c0_110, %c0_111] : memref<1x1x128xf32, #tpu.memory_space<vmem>>, vector<1x1x128xf32>
    %140 = vector.shape_cast %139 : vector<1x1x128xf32> to vector<1x128xf32>
    %141 = vector.broadcast %140 : vector<1x128xf32> to vector<8x128xf32>
    %142 = arith.addf %138, %141 : vector<8x128xf32>
    %143 = math.tanh %142 : vector<8x128xf32>
    %c8_i32 = arith.constant 8 : i32
    %c0_112 = arith.constant 0 : index
    %c0_113 = arith.constant 0 : index
    %c0_114 = arith.constant 0 : index
    %144 = vector.load %arg11[%c0_112, %c0_113, %c0_114] : memref<2x8x128xf32, #tpu.memory_space<vmem>>, vector<1x8x128xf32>
    %145 = vector.shape_cast %144 : vector<1x8x128xf32> to vector<8x128xf32>
    %146 = vector.shape_cast %134 : vector<8x128xf32> to vector<1x8x128xf32>
    tpu.vector_store %arg11[%c0_112, %c0_113, %c0_114], %146 {strides = array<i32>} : memref<2x8x128xf32, #tpu.memory_space<vmem>>, vector<1x8x128xf32>,
    %c1_115 = arith.constant 1 : index
    %c0_116 = arith.constant 0 : index
    %c0_117 = arith.constant 0 : index
    %147 = vector.load %arg11[%c1_115, %c0_116, %c0_117] : memref<2x8x128xf32, #tpu.memory_space<vmem>>, vector<1x8x128xf32>
    %148 = vector.shape_cast %147 : vector<1x8x128xf32> to vector<8x128xf32>
    %149 = vector.shape_cast %143 : vector<8x128xf32> to vector<1x8x128xf32>
    tpu.vector_store %arg11[%c1_115, %c0_116, %c0_117], %149 {strides = array<i32>} : memref<2x8x128xf32, #tpu.memory_space<vmem>>, vector<1x8x128xf32>,
    %c0_118 = arith.constant 0 : index
    %c0_119 = arith.constant 0 : index
    %150 = vector.load %arg8[%c0_118, %c0_119] : memref<128x128xf32, #tpu.memory_space<vmem>>, vector<128x128xf32>
    %cst_120 = arith.constant dense<0.000000e+00> : vector<8x128xf32>
    %151 = tpu.matmul %143, %150, %cst_120 {dimension_numbers = #tpu.dot_dimension_numbers<[1], [0], [0], [1], [0, 0, 1, 1], [], []>} : vector<8x128xf32>, vector<128x128xf32>, vector<8x128xf32> -> vector<8x128xf32>
    %c0_121 = arith.constant 0 : index
    %c0_122 = arith.constant 0 : index
    %152 = vector.load %arg9[%c0_121, %c0_122] : memref<1x128xf32, #tpu.memory_space<vmem>>, vector<1x128xf32>
    %153 = vector.broadcast %152 : vector<1x128xf32> to vector<8x128xf32>
    %154 = arith.addf %151, %153 : vector<8x128xf32>
    %c0_123 = arith.constant 0 : index
    %c0_124 = arith.constant 0 : index
    %155 = vector.load %arg10[%c0_123, %c0_124] : memref<8x128xf32, #tpu.memory_space<vmem>>, vector<8x128xf32>
    tpu.vector_store %arg10[%c0_123, %c0_124], %154 {strides = array<i32>} : memref<8x128xf32, #tpu.memory_space<vmem>>, vector<8x128xf32>,
    return
  }
  func.func @transform_0(%arg0: i32) -> (i32, i32, i32) {
    %c0_i32 = arith.constant 0 : i32
    %c0_i32_0 = arith.constant 0 : i32
    %c0_i32_1 = arith.constant 0 : i32
    return %arg0, %c0_i32, %c0_i32_0 : i32, i32, i32
  }
  func.func @transform_1(%arg0: i32) -> (i32, i32, i32) {
    %c0_i32 = arith.constant 0 : i32
    %c0_i32_0 = arith.constant 0 : i32
    %c0_i32_1 = arith.constant 0 : i32
    %c0_i32_2 = arith.constant 0 : i32
    return %c0_i32, %c0_i32_0, %c0_i32_1 : i32, i32, i32
  }
  func.func @transform_2(%arg0: i32) -> (i32, i32) {
    %c0_i32 = arith.constant 0 : i32
    %c0_i32_0 = arith.constant 0 : i32
    %c0_i32_1 = arith.constant 0 : i32
    return %c0_i32, %c0_i32_0 : i32, i32
  }
  func.func @transform_3(%arg0: i32) -> (i32, i32) {
    %c0_i32 = arith.constant 0 : i32
    %c0_i32_0 = arith.constant 0 : i32
    %c0_i32_1 = arith.constant 0 : i32
    return %c0_i32, %c0_i32_0 : i32, i32
  }
  func.func @transform_4(%arg0: i32) -> (i32, i32) {
    %c0_i32 = arith.constant 0 : i32
    %c0_i32_0 = arith.constant 0 : i32
    %c0_i32_1 = arith.constant 0 : i32
    return %c0_i32, %c0_i32_0 : i32, i32
  }
  func.func @transform_5(%arg0: i32) -> (i32, i32, i32) {
    %c0_i32 = arith.constant 0 : i32
    %c0_i32_0 = arith.constant 0 : i32
    %c0_i32_1 = arith.constant 0 : i32
    %c0_i32_2 = arith.constant 0 : i32
    return %c0_i32, %c0_i32_0, %c0_i32_1 : i32, i32, i32
  }
  func.func @transform_6(%arg0: i32) -> (i32, i32, i32) {
    %c0_i32 = arith.constant 0 : i32
    %c0_i32_0 = arith.constant 0 : i32
    %c0_i32_1 = arith.constant 0 : i32
    %c0_i32_2 = arith.constant 0 : i32
    return %c0_i32, %c0_i32_0, %c0_i32_1 : i32, i32, i32
  }
  func.func @transform_7(%arg0: i32) -> (i32, i32) {
    %c0_i32 = arith.constant 0 : i32
    %c0_i32_0 = arith.constant 0 : i32
    %c0_i32_1 = arith.constant 0 : i32
    return %c0_i32, %c0_i32_0 : i32, i32
  }
  func.func @transform_8(%arg0: i32) -> (i32, i32) {
    %c0_i32 = arith.constant 0 : i32
    %c0_i32_0 = arith.constant 0 : i32
    %c0_i32_1 = arith.constant 0 : i32
    return %c0_i32, %c0_i32_0 : i32, i32
  }
  func.func @transform_9(%arg0: i32) -> (i32, i32) {
    %c0_i32 = arith.constant 0 : i32
    %c0_i32_0 = arith.constant 0 : i32
    %c0_i32_1 = arith.constant 0 : i32
    return %c0_i32, %c0_i32_0 : i32, i32
  }
}

</mosaic_0001>

<llo_original>
// kernel: tpu_custom_call.1
$region0: #{tpu_custom_call.1}
  #allocation0 [shape = 'u32[]', space=smem, size = 0x4, offset = 0x4, fixed_abs, tag = 'smem constant byte address 0x4 - core index']
  #allocation1 [shape = 'u32[144,128]{1,0:T(1,128)}', space=vmem, size = 0x12000, scoped, tag = 'internal scratch']
  #allocation2 [shape = 'f32[2,8,128]{2,1,0:T(8,128)}', space=vmem, size = 0x2000, scoped, tag = 'scratch operand']
  #allocation3 [shape = 'f32[8,8,128]{2,1,0:T(8,128)}', space=vmem, size = 0x8000, scoped, tag = 'scratch operand']
  %s0 = inlined_call_operand.hbm [shape: f32[8,8,128], index: 0, kind: input, shape index: {}]
  %s1 = inlined_call_operand.hbm [shape: f32[2,8,128], index: 1, kind: input, shape index: {}]
  %s2 = inlined_call_operand.hbm [shape: f32[128,128], index: 2, kind: input, shape index: {}]
  %s3 = inlined_call_operand.vmem [shape: f32[1,128], index: 3, kind: input, shape index: {}]
  %s4 = inlined_call_operand.hbm [shape: f32[128,128], index: 4, kind: input, shape index: {}]
  %s5 = inlined_call_operand.hbm [shape: f32[1,256,128], index: 5, kind: input, shape index: {}]
  %s6 = inlined_call_operand.vmem [shape: f32[1,1,128], index: 6, kind: input, shape index: {}]
  %s7 = inlined_call_operand.hbm [shape: f32[128,128], index: 7, kind: input, shape index: {}]
  %s8 = inlined_call_operand.vmem [shape: f32[1,128], index: 8, kind: input, shape index: {}]
  %s9 = inlined_call_operand.hbm [shape: f32[8,128], index: 9, kind: output, shape index: {}]
  %s10 = sld [smem:[#allocation0]]
  $region74: #{tpu_custom_call.1} parent=0
    _
  %s12 = ssub.s32 1, %s10
  %s13 = scalar_select 0, %s12, %s10
  $region1: #{tpu_custom_call.1} parent=0
    #allocation4 [shape = 'u8[32768]{0}', space=vmem, size = 0x8000, scoped, tag = 'input window, operand 0, single buffered']
    #allocation5 [shape = 's32[1]{0}', space=sflag, size = 0x4, scoped, tag = 'scoped memory for tpu_custom_call.1']
    #allocation6 [shape = 's32[1]{0}', space=sflag, size = 0x4, scoped, tag = 'scoped memory for tpu_custom_call.1']
    #allocation7 [shape = 'u8[8192]{0}', space=vmem, size = 0x2000, scoped, tag = 'input window, operand 1, single buffered']
    #allocation8 [shape = 's32[1]{0}', space=sflag, size = 0x4, scoped, tag = 'scoped memory for tpu_custom_call.1']
    #allocation9 [shape = 'u8[65536]{0}', space=vmem, size = 0x10000, scoped, tag = 'input window, operand 2, single buffered']
    #allocation10 [shape = 'u8[65536]{0}', space=vmem, size = 0x10000, scoped, tag = 'input window, operand 4, single buffered']
    #allocation11 [shape = 's32[1]{0}', space=sflag, size = 0x4, scoped, tag = 'scoped memory for tpu_custom_call.1']
    #allocation12 [shape = 'u8[131072]{0}', space=vmem, size = 0x20000, scoped, tag = 'input window, operand 5, single buffered']
    #allocation13 [shape = 'u8[65536]{0}', space=vmem, size = 0x10000, scoped, tag = 'input window, operand 7, single buffered']
    #allocation14 [shape = 's32[1]{0}', space=sflag, size = 0x4, scoped, tag = 'scoped memory for tpu_custom_call.1']
    #allocation15 [shape = 'u8[4096]{0}', space=vmem, size = 0x1000, scoped, tag = 'output window, operand 0, single buffered']
    %14 = vsyncpa [#allocation5], 0
    %15 = vsyncpa [#allocation8], 0
    %16 = vsyncpa [#allocation11], 0
    %17 = vsyncpa [#allocation14], 0
    %18 = vsyncpa [#allocation6], 0
    // Predicated region
    $region2: #{tpu_custom_call.1} parent=1 // pred_check
      _
    $region3: #{tpu_custom_call.1} parent=1 // pred_check_branch
      %20 = sbr.rel (0) target = $region5
    $region4: #{tpu_custom_call.1} parent=1 // pred_region
      %s22 = ssub.s32 1024, 1024
      %23 = vsyncadd [#allocation5], %s22
      %s24 = sshll.u32 [#allocation4], 4
      %s25 = int_to_ptr.vmem [resolvable:$true] %s24
      %30 = dma.hbm_to_vmem [thread:$0]  %s0, 1024, %s25, [#allocation5], 128, 128, 8
    $region5: #{tpu_custom_call.1} parent=1 // pred_fallthru
      _
    // Predicated region
    $region6: #{tpu_custom_call.1} parent=1 // pred_check
      _
    $region7: #{tpu_custom_call.1} parent=1 // pred_check_branch
      %32 = sbr.rel (0) target = $region9
    $region8: #{tpu_custom_call.1} parent=1 // pred_region
      %s34 = ssub.s32 256, 256
      %35 = vsyncadd [#allocation8], %s34
      %s36 = sshll.u32 [#allocation7], 4
      %s37 = int_to_ptr.vmem [resolvable:$true] %s36
      %42 = dma.hbm_to_vmem [thread:$0]  %s1, 256, %s37, [#allocation8], 128, 128, 8
    $region9: #{tpu_custom_call.1} parent=1 // pred_fallthru
      _
    // Predicated region
    $region10: #{tpu_custom_call.1} parent=1 // pred_check
      _
    $region11: #{tpu_custom_call.1} parent=1 // pred_check_branch
      %44 = sbr.rel (0) target = $region13
    $region12: #{tpu_custom_call.1} parent=1 // pred_region
      %s46 = ssub.s32 2048, 2048
      %47 = vsyncadd [#allocation8], %s46
      %s48 = sshll.u32 [#allocation9], 4
      %s49 = int_to_ptr.vmem [resolvable:$true] %s48
      %54 = dma.hbm_to_vmem [thread:$0]  %s2, 2048, %s49, [#allocation8], 128, 128, 8
    $region13: #{tpu_custom_call.1} parent=1 // pred_fallthru
      _
    // Predicated region
    $region14: #{tpu_custom_call.1} parent=1 // pred_check
      _
    $region15: #{tpu_custom_call.1} parent=1 // pred_check_branch
      %56 = sbr.rel (0) target = $region17
    $region16: #{tpu_custom_call.1} parent=1 // pred_region
      _
    $region17: #{tpu_custom_call.1} parent=1 // pred_fallthru
      _
    // Predicated region
    $region18: #{tpu_custom_call.1} parent=1 // pred_check
      _
    $region19: #{tpu_custom_call.1} parent=1 // pred_check_branch
      %58 = sbr.rel (0) target = $region21
    $region20: #{tpu_custom_call.1} parent=1 // pred_region
      %s60 = ssub.s32 2048, 2048
      %61 = vsyncadd [#allocation11], %s60
      %s62 = sshll.u32 [#allocation10], 4
      %s63 = int_to_ptr.vmem [resolvable:$true] %s62
      %68 = dma.hbm_to_vmem [thread:$0]  %s4, 2048, %s63, [#allocation11], 128, 128, 8
    $region21: #{tpu_custom_call.1} parent=1 // pred_fallthru
      _
    // Predicated region
    $region22: #{tpu_custom_call.1} parent=1 // pred_check
      _
    $region23: #{tpu_custom_call.1} parent=1 // pred_check_branch
      %70 = sbr.rel (0) target = $region25
    $region24: #{tpu_custom_call.1} parent=1 // pred_region
      %s72 = ssub.s32 4096, 4096
      %73 = vsyncadd [#allocation11], %s72
      %s74 = sshll.u32 [#allocation12], 4
      %s75 = int_to_ptr.vmem [resolvable:$true] %s74
      %80 = dma.hbm_to_vmem [thread:$0]  %s5, 4096, %s75, [#allocation11], 128, 128, 8
    $region25: #{tpu_custom_call.1} parent=1 // pred_fallthru
      _
    // Predicated region
    $region26: #{tpu_custom_call.1} parent=1 // pred_check
      _
    $region27: #{tpu_custom_call.1} parent=1 // pred_check_branch
      %82 = sbr.rel (0) target = $region29
    $region28: #{tpu_custom_call.1} parent=1 // pred_region
      _
    $region29: #{tpu_custom_call.1} parent=1 // pred_fallthru
      _
    // Predicated region
    $region30: #{tpu_custom_call.1} parent=1 // pred_check
      _
    $region31: #{tpu_custom_call.1} parent=1 // pred_check_branch
      %84 = sbr.rel (0) target = $region33
    $region32: #{tpu_custom_call.1} parent=1 // pred_region
      %s86 = ssub.s32 2048, 2048
      %87 = vsyncadd [#allocation14], %s86
      %s88 = sshll.u32 [#allocation13], 4
      %s89 = int_to_ptr.vmem [resolvable:$true] %s88
      %94 = dma.hbm_to_vmem [thread:$0]  %s7, 2048, %s89, [#allocation14], 128, 128, 8
    $region33: #{tpu_custom_call.1} parent=1 // pred_fallthru
      _
    // Predicated region
    $region34: #{tpu_custom_call.1} parent=1 // pred_check
      _
    $region35: #{tpu_custom_call.1} parent=1 // pred_check_branch
      %96 = sbr.rel (0) target = $region37
    $region36: #{tpu_custom_call.1} parent=1 // pred_region
      _
    $region37: #{tpu_custom_call.1} parent=1 // pred_fallthru
      _
    // Predicated region
    $region38: #{tpu_custom_call.1} parent=1 // pred_check
      _
    $region39: #{tpu_custom_call.1} parent=1 // pred_check_branch
      %98 = sbr.rel (0) target = $region41
    $region40: #{tpu_custom_call.1} parent=1 // pred_region
      %99 = dma.done [#allocation5], 1024
    $region41: #{tpu_custom_call.1} parent=1 // pred_fallthru
      _
    // Predicated region
    $region42: #{tpu_custom_call.1} parent=1 // pred_check
      _
    $region43: #{tpu_custom_call.1} parent=1 // pred_check_branch
      %101 = sbr.rel (0) target = $region45
    $region44: #{tpu_custom_call.1} parent=1 // pred_region
      %102 = dma.done [#allocation8], 256
    $region45: #{tpu_custom_call.1} parent=1 // pred_fallthru
      _
    // Predicated region
    $region46: #{tpu_custom_call.1} parent=1 // pred_check
      _
    $region47: #{tpu_custom_call.1} parent=1 // pred_check_branch
      %104 = sbr.rel (0) target = $region49
    $region48: #{tpu_custom_call.1} parent=1 // pred_region
      %105 = dma.done [#allocation8], 2048
    $region49: #{tpu_custom_call.1} parent=1 // pred_fallthru
      _
    // Predicated region
    $region50: #{tpu_custom_call.1} parent=1 // pred_check
      _
    $region51: #{tpu_custom_call.1} parent=1 // pred_check_branch
      %107 = sbr.rel (0) target = $region53
    $region52: #{tpu_custom_call.1} parent=1 // pred_region
      %108 = dma.done [#allocation11], 2048
    $region53: #{tpu_custom_call.1} parent=1 // pred_fallthru
      _
    // Predicated region
    $region54: #{tpu_custom_call.1} parent=1 // pred_check
      _
    $region55: #{tpu_custom_call.1} parent=1 // pred_check_branch
      %110 = sbr.rel (0) target = $region57
    $region56: #{tpu_custom_call.1} parent=1 // pred_region
      %111 = dma.done [#allocation11], 4096
    $region57: #{tpu_custom_call.1} parent=1 // pred_fallthru
      _
    // Predicated region
    $region58: #{tpu_custom_call.1} parent=1 // pred_check
      _
    $region59: #{tpu_custom_call.1} parent=1 // pred_check_branch
      %113 = sbr.rel (0) target = $region61
    $region60: #{tpu_custom_call.1} parent=1 // pred_region
      %114 = dma.done [#allocation14], 2048
    $region61: #{tpu_custom_call.1} parent=1 // pred_fallthru
      _
    %p115 = scmp.eq.s32.totalorder 0, 0
    // Predicated region
    $region62: #{tpu_custom_call.1} parent=1 // pred_check
      %p116 = pneg %p115
    $region63: #{tpu_custom_call.1} parent=1 // pred_check_branch
      %118 = sbr.rel (%p116) target = $region65
    $region64: #{tpu_custom_call.1} parent=1 // pred_region
      %v119 = vld [vmem:[#allocation7] sm:$0xff]
      %v120 = vld [vmem:[#allocation7 + $0x8] sm:$0xff]
      %121 = vst [vmem:[#allocation2] sm:$0xff] %v119
      %122 = vst [vmem:[#allocation2 + $0x8] sm:$0xff] %v120
    $region65: #{tpu_custom_call.1} parent=1 // pred_fallthru
      _
    %v123 = vld [vmem:[#allocation4] sm:$0xff]
    %v124 = vld [vmem:[#allocation4 + $0x8] sm:$0xff]
    %v125 = vld [vmem:[#allocation4 + $0x10] sm:$0xff]
    %v126 = vld [vmem:[#allocation4 + $0x18] sm:$0xff]
    %v127 = vld [vmem:[#allocation4 + $0x20] sm:$0xff]
    %v128 = vld [vmem:[#allocation4 + $0x28] sm:$0xff]
    %v129 = vld [vmem:[#allocation4 + $0x30] sm:$0xff]
    %v130 = vld [vmem:[#allocation4 + $0x38] sm:$0xff]
    %v131 = vld [vmem:[#allocation9] sm:$0xff]
    %v132 = vld [vmem:[#allocation9 + $0x8] sm:$0xff]
    %v133 = vld [vmem:[#allocation9 + $0x10] sm:$0xff]
    %v134 = vld [vmem:[#allocation9 + $0x18] sm:$0xff]
    %v135 = vld [vmem:[#allocation9 + $0x20] sm:$0xff]
    %v136 = vld [vmem:[#allocation9 + $0x28] sm:$0xff]
    %v137 = vld [vmem:[#allocation9 + $0x30] sm:$0xff]
    %v138 = vld [vmem:[#allocation9 + $0x38] sm:$0xff]
    %v139 = vld [vmem:[#allocation9 + $0x40] sm:$0xff]
    %v140 = vld [vmem:[#allocation9 + $0x48] sm:$0xff]
    %v141 = vld [vmem:[#allocation9 + $0x50] sm:$0xff]
    %v142 = vld [vmem:[#allocation9 + $0x58] sm:$0xff]
    %v143 = vld [vmem:[#allocation9 + $0x60] sm:$0xff]
    %v144 = vld [vmem:[#allocation9 + $0x68] sm:$0xff]
    %v145 = vld [vmem:[#allocation9 + $0x70] sm:$0xff]
    %v146 = vld [vmem:[#allocation9 + $0x78] sm:$0xff]
    %v147 = vld [vmem:[%s3] sm:$0x1]
    %v149 = vlaneseq
    %v150 = vshrl.u32 %v149, 7
    %v151 = vsub.s32 0, %v150
    %v152 = vrot.slane %v147, %v151
    %154 = vmatprep.subr.mxu0 0.0
    %155 = vmatpush1.msra.mxu0 %v131
    %156 = vmatprep.subr.mxu0 0.0
    %157 = vmatpush1.msra.mxu0 %v132
    %158 = vmatprep.subr.mxu0 0.0
    %159 = vmatpush1.msra.mxu0 %v133
    %160 = vmatprep.subr.mxu0 0.0
    %161 = vmatpush1.msra.mxu0 %v134
    %162 = vmatprep.subr.mxu0 0.0
    %163 = vmatpush1.msra.mxu0 %v135
    %164 = vmatprep.subr.mxu0 0.0
    %165 = vmatpush1.msra.mxu0 %v136
    %166 = vmatprep.subr.mxu0 0.0
    %167 = vmatpush1.msra.mxu0 %v137
    %168 = vmatprep.subr.mxu0 0.0
    %169 = vmatpush1.msra.mxu0 %v138
    %170 = vmatprep.subr.mxu0 0.0
    %171 = vmatpush1.msra.mxu0 %v139
    %172 = vmatprep.subr.mxu0 0.0
    %173 = vmatpush1.msra.mxu0 %v140
    %174 = vmatprep.subr.mxu0 0.0
    %175 = vmatpush1.msra.mxu0 %v141
    %176 = vmatprep.subr.mxu0 0.0
    %177 = vmatpush1.msra.mxu0 %v142
    %178 = vmatprep.subr.mxu0 0.0
    %179 = vmatpush1.msra.mxu0 %v143
    %180 = vmatprep.subr.mxu0 0.0
    %181 = vmatpush1.msra.mxu0 %v144
    %182 = vmatprep.subr.mxu0 0.0
    %183 = vmatpush1.msra.mxu0 %v145
    %184 = vmatprep.subr.mxu0 0.0
    %185 = vmatpush1.msra.mxu0 %v146
    %186 = vmatprep.subr.mxu0 0.0
    %187 = vmatpush1.msra.mxu0 0.0
    %188 = vmatprep.subr.mxu0 0.0
    %189 = vmatpush1.msra.mxu0 0.0
    %190 = vmatprep.subr.mxu0 0.0
    %191 = vmatpush1.msra.mxu0 0.0
    %192 = vmatprep.subr.mxu0 0.0
    %193 = vmatpush1.msra.mxu0 0.0
    %194 = vmatprep.subr.mxu0 0.0
    %195 = vmatpush1.msra.mxu0 0.0
    %196 = vmatprep.subr.mxu0 0.0
    %197 = vmatpush1.msra.mxu0 0.0
    %198 = vmatprep.subr.mxu0 0.0
    %199 = vmatpush1.msra.mxu0 0.0
    %200 = vmatprep.subr.mxu0 0.0
    %201 = vmatpush1.msra.mxu0 0.0
    %202 = vmatprep.subr.mxu0 0.0
    %203 = vmatpush1.msra.mxu0 0.0
    %204 = vmatprep.subr.mxu0 0.0
    %205 = vmatpush1.msra.mxu0 0.0
    %206 = vmatprep.subr.mxu0 0.0
    %207 = vmatpush1.msra.mxu0 0.0
    %208 = vmatprep.subr.mxu0 0.0
    %209 = vmatpush1.msra.mxu0 0.0
    %210 = vmatprep.subr.mxu0 0.0
    %211 = vmatpush1.msra.mxu0 0.0
    %212 = vmatprep.subr.mxu0 0.0
    %213 = vmatpush1.msra.mxu0 0.0
    %214 = vmatprep.subr.mxu0 0.0
    %215 = vmatpush1.msra.mxu0 0.0
    %216 = vmatprep.subr.mxu0 0.0
    %217 = vmatpush1.msra.mxu0 0.0
    %218 = vmatprep.mubr.f32.mxu0 0.0
    %219 = vmatmul.mubr.f32.gmra.mrb[0].mxu0 %v123
    %v220 = vpop.f32.mrb[0].mxu0
    %v221 = vadd.f32 %v152, %v220
    %v222 = vpop.f32.mrb[0].mxu0
    %223 = vmatprep.mubr.f32.mxu0 0.0
    %224 = vmatmul.mubr.f32.gmra.mrb[0].mxu0 %v124
    %v225 = vpop.f32.mrb[0].mxu0
    %v226 = vadd.f32 %v152, %v225
    %v227 = vpop.f32.mrb[0].mxu0
    %228 = vmatprep.mubr.f32.mxu0 0.0
    %229 = vmatmul.mubr.f32.gmra.mrb[0].mxu0 %v125
    %v230 = vpop.f32.mrb[0].mxu0
    %v231 = vadd.f32 %v152, %v230
    %v232 = vpop.f32.mrb[0].mxu0
    %233 = vmatprep.mubr.f32.mxu0 0.0
    %234 = vmatmul.mubr.f32.gmra.mrb[0].mxu0 %v126
    %v235 = vpop.f32.mrb[0].mxu0
    %v236 = vadd.f32 %v152, %v235
    %v237 = vpop.f32.mrb[0].mxu0
    %238 = vmatprep.mubr.f32.mxu0 0.0
    %239 = vmatmul.mubr.f32.gmra.mrb[0].mxu0 %v127
    %v240 = vpop.f32.mrb[0].mxu0
    %v241 = vadd.f32 %v152, %v240
    %v242 = vpop.f32.mrb[0].mxu0
    %243 = vmatprep.mubr.f32.mxu0 0.0
    %244 = vmatmul.mubr.f32.gmra.mrb[0].mxu0 %v128
    %v245 = vpop.f32.mrb[0].mxu0
    %v246 = vadd.f32 %v152, %v245
    %v247 = vpop.f32.mrb[0].mxu0
    %248 = vmatprep.mubr.f32.mxu0 0.0
    %249 = vmatmul.mubr.f32.gmra.mrb[0].mxu0 %v129
    %v250 = vpop.f32.mrb[0].mxu0
    %v251 = vadd.f32 %v152, %v250
    %v252 = vpop.f32.mrb[0].mxu0
    %253 = vmatprep.mubr.f32.mxu0 0.0
    %254 = vmatmul.mubr.f32.gmra.mrb[0].mxu0 %v130
    %v255 = vpop.f32.mrb[0].mxu0
    %v256 = vadd.f32 %v152, %v255
    %v257 = vpop.f32.mrb[0].mxu0
    %258 = vdwg.mxu0
    %259 = vst [vmem:[#allocation3] sm:$0xff] %v221
    %260 = vst [vmem:[#allocation3 + $0x8] sm:$0xff] %v226
    %261 = vst [vmem:[#allocation3 + $0x10] sm:$0xff] %v231
    %262 = vst [vmem:[#allocation3 + $0x18] sm:$0xff] %v236
    %263 = vst [vmem:[#allocation3 + $0x20] sm:$0xff] %v241
    %264 = vst [vmem:[#allocation3 + $0x28] sm:$0xff] %v246
    %265 = vst [vmem:[#allocation3 + $0x30] sm:$0xff] %v251
    %266 = vst [vmem:[#allocation3 + $0x38] sm:$0xff] %v256
    %v267 = vld [vmem:[#allocation2] sm:$0xff]
    %s268 = scalar_lea.vmem [#allocation2], 8
    %v269 = vld [vmem:[%s268] sm:$0xff]
    %v270 = vld [vmem:[#allocation3] sm:$0xff]
    %v271 = vld [vmem:[#allocation10] sm:$0xff]
    %v272 = vld [vmem:[#allocation10 + $0x8] sm:$0xff]
    %v273 = vld [vmem:[#allocation10 + $0x10] sm:$0xff]
    %v274 = vld [vmem:[#allocation10 + $0x18] sm:$0xff]
    %v275 = vld [vmem:[#allocation10 + $0x20] sm:$0xff]
    %v276 = vld [vmem:[#allocation10 + $0x28] sm:$0xff]
    %v277 = vld [vmem:[#allocation10 + $0x30] sm:$0xff]
    %v278 = vld [vmem:[#allocation10 + $0x38] sm:$0xff]
    %v279 = vld [vmem:[#allocation10 + $0x40] sm:$0xff]
    %v280 = vld [vmem:[#allocation10 + $0x48] sm:$0xff]
    %v281 = vld [vmem:[#allocation10 + $0x50] sm:$0xff]
    %v282 = vld [vmem:[#allocation10 + $0x58] sm:$0xff]
    %v283 = vld [vmem:[#allocation10 + $0x60] sm:$0xff]
    %v284 = vld [vmem:[#allocation10 + $0x68] sm:$0xff]
    %v285 = vld [vmem:[#allocation10 + $0x70] sm:$0xff]
    %v286 = vld [vmem:[#allocation10 + $0x78] sm:$0xff]
    %287 = vmatprep.subr.mxu0 0.0
    %288 = vmatpush1.msra.mxu0 %v271
    %289 = vmatprep.subr.mxu0 0.0
    %290 = vmatpush1.msra.mxu0 %v272
    %291 = vmatprep.subr.mxu0 0.0
    %292 = vmatpush1.msra.mxu0 %v273
    %293 = vmatprep.subr.mxu0 0.0
    %294 = vmatpush1.msra.mxu0 %v274
    %295 = vmatprep.subr.mxu0 0.0
    %296 = vmatpush1.msra.mxu0 %v275
    %297 = vmatprep.subr.mxu0 0.0
    %298 = vmatpush1.msra.mxu0 %v276
    %299 = vmatprep.subr.mxu0 0.0
    %300 = vmatpush1.msra.mxu0 %v277
    %301 = vmatprep.subr.mxu0 0.0
    %302 = vmatpush1.msra.mxu0 %v278
    %303 = vmatprep.subr.mxu0 0.0
    %304 = vmatpush1.msra.mxu0 %v279
    %305 = vmatprep.subr.mxu0 0.0
    %306 = vmatpush1.msra.mxu0 %v280
    %307 = vmatprep.subr.mxu0 0.0
    %308 = vmatpush1.msra.mxu0 %v281
    %309 = vmatprep.subr.mxu0 0.0
    %310 = vmatpush1.msra.mxu0 %v282
    %311 = vmatprep.subr.mxu0 0.0
    %312 = vmatpush1.msra.mxu0 %v283
    %313 = vmatprep.subr.mxu0 0.0
    %314 = vmatpush1.msra.mxu0 %v284
    %315 = vmatprep.subr.mxu0 0.0
    %316 = vmatpush1.msra.mxu0 %v285
    %317 = vmatprep.subr.mxu0 0.0
    %318 = vmatpush1.msra.mxu0 %v286
    %319 = vmatprep.subr.mxu0 0.0
    %320 = vmatpush1.msra.mxu0 0.0
    %321 = vmatprep.subr.mxu0 0.0
    %322 = vmatpush1.msra.mxu0 0.0
    %323 = vmatprep.subr.mxu0 0.0
    %324 = vmatpush1.msra.mxu0 0.0
    %325 = vmatprep.subr.mxu0 0.0
    %326 = vmatpush1.msra.mxu0 0.0
    %327 = vmatprep.subr.mxu0 0.0
    %328 = vmatpush1.msra.mxu0 0.0
    %329 = vmatprep.subr.mxu0 0.0
    %330 = vmatpush1.msra.mxu0 0.0
    %331 = vmatprep.subr.mxu0 0.0
    %332 = vmatpush1.msra.mxu0 0.0
    %333 = vmatprep.subr.mxu0 0.0
    %334 = vmatpush1.msra.mxu0 0.0
    %335 = vmatprep.subr.mxu0 0.0
    %336 = vmatpush1.msra.mxu0 0.0
    %337 = vmatprep.subr.mxu0 0.0
    %338 = vmatpush1.msra.mxu0 0.0
    %339 = vmatprep.subr.mxu0 0.0
    %340 = vmatpush1.msra.mxu0 0.0
    %341 = vmatprep.subr.mxu0 0.0
    %342 = vmatpush1.msra.mxu0 0.0
    %343 = vmatprep.subr.mxu0 0.0
    %344 = vmatpush1.msra.mxu0 0.0
    %345 = vmatprep.subr.mxu0 0.0
    %346 = vmatpush1.msra.mxu0 0.0
    %347 = vmatprep.subr.mxu0 0.0
    %348 = vmatpush1.msra.mxu0 0.0
    %349 = vmatprep.subr.mxu0 0.0
    %350 = vmatpush1.msra.mxu0 0.0
    %351 = vmatprep.mubr.f32.mxu0 0.0
    %352 = vmatmul.mubr.f32.gmra.mrb[0].mxu0 %v267
    %v353 = vpop.f32.mrb[0].mxu0
    %v354 = vadd.f32 0.0, %v353
    %v355 = vpop.f32.mrb[0].mxu0
    %356 = vdwg.mxu0
    %v357 = vadd.f32 %v270, %v354
    %v358 = vtanh.pop %v357
    %v359 = vld [vmem:[#allocation12] sm:$0xff]
    %v360 = vld [vmem:[#allocation12 + $0x8] sm:$0xff]
    %v361 = vld [vmem:[#allocation12 + $0x10] sm:$0xff]
    %v362 = vld [vmem:[#allocation12 + $0x18] sm:$0xff]
    %v363 = vld [vmem:[#allocation12 + $0x20] sm:$0xff]
    %v364 = vld [vmem:[#allocation12 + $0x28] sm:$0xff]
    %v365 = vld [vmem:[#allocation12 + $0x30] sm:$0xff]
    %v366 = vld [vmem:[#allocation12 + $0x38] sm:$0xff]
    %v367 = vld [vmem:[#allocation12 + $0x40] sm:$0xff]
    %v368 = vld [vmem:[#allocation12 + $0x48] sm:$0xff]
    %v369 = vld [vmem:[#allocation12 + $0x50] sm:$0xff]
    %v370 = vld [vmem:[#allocation12 + $0x58] sm:$0xff]
    %v371 = vld [vmem:[#allocation12 + $0x60] sm:$0xff]
    %v372 = vld [vmem:[#allocation12 + $0x68] sm:$0xff]
    %v373 = vld [vmem:[#allocation12 + $0x70] sm:$0xff]
    %v374 = vld [vmem:[#allocation12 + $0x78] sm:$0xff]
    %v375 = vld [vmem:[#allocation12 + $0x80] sm:$0xff]
    %v376 = vld [vmem:[#allocation12 + $0x88] sm:$0xff]
    %v377 = vld [vmem:[#allocation12 + $0x90] sm:$0xff]
    %v378 = vld [vmem:[#allocation12 + $0x98] sm:$0xff]
    %v379 = vld [vmem:[#allocation12 + $0xa0] sm:$0xff]
    %v380 = vld [vmem:[#allocation12 + $0xa8] sm:$0xff]
    %v381 = vld [vmem:[#allocation12 + $0xb0] sm:$0xff]
    %v382 = vld [vmem:[#allocation12 + $0xb8] sm:$0xff]
    %v383 = vld [vmem:[#allocation12 + $0xc0] sm:$0xff]
    %v384 = vld [vmem:[#allocation12 + $0xc8] sm:$0xff]
    %v385 = vld [vmem:[#allocation12 + $0xd0] sm:$0xff]
    %v386 = vld [vmem:[#allocation12 + $0xd8] sm:$0xff]
    %v387 = vld [vmem:[#allocation12 + $0xe0] sm:$0xff]
    %v388 = vld [vmem:[#allocation12 + $0xe8] sm:$0xff]
    %v389 = vld [vmem:[#allocation12 + $0xf0] sm:$0xff]
    %v390 = vld [vmem:[#allocation12 + $0xf8] sm:$0xff]
    %v391 = vld [vmem:[%s6] sm:$0x1]
    %v393 = vlaneseq
    %v394 = vshrl.u32 %v393, 7
    %v395 = vsub.s32 0, %v394
    %v396 = vrot.slane %v391, %v395
    %398 = vmatprep.subr.mxu0 0.0
    %399 = vmatpush1.msra.mxu0 %v359
    %400 = vmatprep.subr.mxu0 0.0
    %401 = vmatpush1.msra.mxu0 %v360
    %402 = vmatprep.subr.mxu0 0.0
    %403 = vmatpush1.msra.mxu0 %v361
    %404 = vmatprep.subr.mxu0 0.0
    %405 = vmatpush1.msra.mxu0 %v362
    %406 = vmatprep.subr.mxu0 0.0
    %407 = vmatpush1.msra.mxu0 %v363
    %408 = vmatprep.subr.mxu0 0.0
    %409 = vmatpush1.msra.mxu0 %v364
    %410 = vmatprep.subr.mxu0 0.0
    %411 = vmatpush1.msra.mxu0 %v365
    %412 = vmatprep.subr.mxu0 0.0
    %413 = vmatpush1.msra.mxu0 %v366
    %414 = vmatprep.subr.mxu0 0.0
    %415 = vmatpush1.msra.mxu0 %v367
    %416 = vmatprep.subr.mxu0 0.0
    %417 = vmatpush1.msra.mxu0 %v368
    %418 = vmatprep.subr.mxu0 0.0
    %419 = vmatpush1.msra.mxu0 %v369
    %420 = vmatprep.subr.mxu0 0.0
    %421 = vmatpush1.msra.mxu0 %v370
    %422 = vmatprep.subr.mxu0 0.0
    %423 = vmatpush1.msra.mxu0 %v371
    %424 = vmatprep.subr.mxu0 0.0
    %425 = vmatpush1.msra.mxu0 %v372
    %426 = vmatprep.subr.mxu0 0.0
    %427 = vmatpush1.msra.mxu0 %v373
    %428 = vmatprep.subr.mxu0 0.0
    %429 = vmatpush1.msra.mxu0 %v374
    %430 = vmatprep.subr.mxu0 0.0
    %431 = vmatpush1.msra.mxu0 %v375
    %432 = vmatprep.subr.mxu0 0.0
    %433 = vmatpush1.msra.mxu0 %v376
    %434 = vmatprep.subr.mxu0 0.0
    %435 = vmatpush1.msra.mxu0 %v377
    %436 = vmatprep.subr.mxu0 0.0
    %437 = vmatpush1.msra.mxu0 %v378
    %438 = vmatprep.subr.mxu0 0.0
    %439 = vmatpush1.msra.mxu0 %v379
    %440 = vmatprep.subr.mxu0 0.0
    %441 = vmatpush1.msra.mxu0 %v380
    %442 = vmatprep.subr.mxu0 0.0
    %443 = vmatpush1.msra.mxu0 %v381
    %444 = vmatprep.subr.mxu0 0.0
    %445 = vmatpush1.msra.mxu0 %v382
    %446 = vmatprep.subr.mxu0 0.0
    %447 = vmatpush1.msra.mxu0 %v383
    %448 = vmatprep.subr.mxu0 0.0
    %449 = vmatpush1.msra.mxu0 %v384
    %450 = vmatprep.subr.mxu0 0.0
    %451 = vmatpush1.msra.mxu0 %v385
    %452 = vmatprep.subr.mxu0 0.0
    %453 = vmatpush1.msra.mxu0 %v386
    %454 = vmatprep.subr.mxu0 0.0
    %455 = vmatpush1.msra.mxu0 %v387
    %456 = vmatprep.subr.mxu0 0.0
    %457 = vmatpush1.msra.mxu0 %v388
    %458 = vmatprep.subr.mxu0 0.0
    %459 = vmatpush1.msra.mxu0 %v389
    %460 = vmatprep.subr.mxu0 0.0
    %461 = vmatpush1.msra.mxu0 %v390
    %462 = vmatprep.mubr.f32.mxu0 %v269
    %463 = vmatmul.mubr.f32.gmra.mrb[0].mxu0 %v358
    %v464 = vpop.f32.mrb[0].mxu0
    %v465 = vadd.f32 %v396, %v464
    %v466 = vpop.f32.mrb[0].mxu0
    %467 = vdwg.mxu0
    %v468 = vtanh.pop %v465
    %s469 = scalar_lea.vmem [#allocation3], 8
    %v470 = vld [vmem:[%s469] sm:$0xff]
    %471 = vmatprep.subr.mxu0 0.0
    %472 = vmatpush1.msra.mxu0 %v271
    %473 = vmatprep.subr.mxu0 0.0
    %474 = vmatpush1.msra.mxu0 %v272
    %475 = vmatprep.subr.mxu0 0.0
    %476 = vmatpush1.msra.mxu0 %v273
    %477 = vmatprep.subr.mxu0 0.0
    %478 = vmatpush1.msra.mxu0 %v274
    %479 = vmatprep.subr.mxu0 0.0
    %480 = vmatpush1.msra.mxu0 %v275
    %481 = vmatprep.subr.mxu0 0.0
    %482 = vmatpush1.msra.mxu0 %v276
    %483 = vmatprep.subr.mxu0 0.0
    %484 = vmatpush1.msra.mxu0 %v277
    %485 = vmatprep.subr.mxu0 0.0
    %486 = vmatpush1.msra.mxu0 %v278
    %487 = vmatprep.subr.mxu0 0.0
    %488 = vmatpush1.msra.mxu0 %v279
    %489 = vmatprep.subr.mxu0 0.0
    %490 = vmatpush1.msra.mxu0 %v280
    %491 = vmatprep.subr.mxu0 0.0
    %492 = vmatpush1.msra.mxu0 %v281
    %493 = vmatprep.subr.mxu0 0.0
    %494 = vmatpush1.msra.mxu0 %v282
    %495 = vmatprep.subr.mxu0 0.0
    %496 = vmatpush1.msra.mxu0 %v283
    %497 = vmatprep.subr.mxu0 0.0
    %498 = vmatpush1.msra.mxu0 %v284
    %499 = vmatprep.subr.mxu0 0.0
    %500 = vmatpush1.msra.mxu0 %v285
    %501 = vmatprep.subr.mxu0 0.0
    %502 = vmatpush1.msra.mxu0 %v286
    %503 = vmatprep.subr.mxu0 0.0
    %504 = vmatpush1.msra.mxu0 0.0
    %505 = vmatprep.subr.mxu0 0.0
    %506 = vmatpush1.msra.mxu0 0.0
    %507 = vmatprep.subr.mxu0 0.0
    %508 = vmatpush1.msra.mxu0 0.0
    %509 = vmatprep.subr.mxu0 0.0
    %510 = vmatpush1.msra.mxu0 0.0
    %511 = vmatprep.subr.mxu0 0.0
    %512 = vmatpush1.msra.mxu0 0.0
    %513 = vmatprep.subr.mxu0 0.0
    %514 = vmatpush1.msra.mxu0 0.0
    %515 = vmatprep.subr.mxu0 0.0
    %516 = vmatpush1.msra.mxu0 0.0
    %517 = vmatprep.subr.mxu0 0.0
    %518 = vmatpush1.msra.mxu0 0.0
    %519 = vmatprep.subr.mxu0 0.0
    %520 = vmatpush1.msra.mxu0 0.0
    %521 = vmatprep.subr.mxu0 0.0
    %522 = vmatpush1.msra.mxu0 0.0
    %523 = vmatprep.subr.mxu0 0.0
    %524 = vmatpush1.msra.mxu0 0.0
    %525 = vmatprep.subr.mxu0 0.0
    %526 = vmatpush1.msra.mxu0 0.0
    %527 = vmatprep.subr.mxu0 0.0
    %528 = vmatpush1.msra.mxu0 0.0
    %529 = vmatprep.subr.mxu0 0.0
    %530 = vmatpush1.msra.mxu0 0.0
    %531 = vmatprep.subr.mxu0 0.0
    %532 = vmatpush1.msra.mxu0 0.0
    %533 = vmatprep.subr.mxu0 0.0
    %534 = vmatpush1.msra.mxu0 0.0
    %535 = vmatprep.mubr.f32.mxu0 0.0
    %536 = vmatmul.mubr.f32.gmra.mrb[0].mxu0 %v358
    %v537 = vpop.f32.mrb[0].mxu0
    %v538 = vadd.f32 0.0, %v537
    %v539 = vpop.f32.mrb[0].mxu0
    %540 = vdwg.mxu0
    %v541 = vadd.f32 %v470, %v538
    %v542 = vtanh.pop %v541
    %543 = vmatprep.subr.mxu0 0.0
    %544 = vmatpush1.msra.mxu0 %v359
    %545 = vmatprep.subr.mxu0 0.0
    %546 = vmatpush1.msra.mxu0 %v360
    %547 = vmatprep.subr.mxu0 0.0
    %548 = vmatpush1.msra.mxu0 %v361
    %549 = vmatprep.subr.mxu0 0.0
    %550 = vmatpush1.msra.mxu0 %v362
    %551 = vmatprep.subr.mxu0 0.0
    %552 = vmatpush1.msra.mxu0 %v363
    %553 = vmatprep.subr.mxu0 0.0
    %554 = vmatpush1.msra.mxu0 %v364
    %555 = vmatprep.subr.mxu0 0.0
    %556 = vmatpush1.msra.mxu0 %v365
    %557 = vmatprep.subr.mxu0 0.0
    %558 = vmatpush1.msra.mxu0 %v366
    %559 = vmatprep.subr.mxu0 0.0
    %560 = vmatpush1.msra.mxu0 %v367
    %561 = vmatprep.subr.mxu0 0.0
    %562 = vmatpush1.msra.mxu0 %v368
    %563 = vmatprep.subr.mxu0 0.0
    %564 = vmatpush1.msra.mxu0 %v369
    %565 = vmatprep.subr.mxu0 0.0
    %566 = vmatpush1.msra.mxu0 %v370
    %567 = vmatprep.subr.mxu0 0.0
    %568 = vmatpush1.msra.mxu0 %v371
    %569 = vmatprep.subr.mxu0 0.0
    %570 = vmatpush1.msra.mxu0 %v372
    %571 = vmatprep.subr.mxu0 0.0
    %572 = vmatpush1.msra.mxu0 %v373
    %573 = vmatprep.subr.mxu0 0.0
    %574 = vmatpush1.msra.mxu0 %v374
    %575 = vmatprep.subr.mxu0 0.0
    %576 = vmatpush1.msra.mxu0 %v375
    %577 = vmatprep.subr.mxu0 0.0
    %578 = vmatpush1.msra.mxu0 %v376
    %579 = vmatprep.subr.mxu0 0.0
    %580 = vmatpush1.msra.mxu0 %v377
    %581 = vmatprep.subr.mxu0 0.0
    %582 = vmatpush1.msra.mxu0 %v378
    %583 = vmatprep.subr.mxu0 0.0
    %584 = vmatpush1.msra.mxu0 %v379
    %585 = vmatprep.subr.mxu0 0.0
    %586 = vmatpush1.msra.mxu0 %v380
    %587 = vmatprep.subr.mxu0 0.0
    %588 = vmatpush1.msra.mxu0 %v381
    %589 = vmatprep.subr.mxu0 0.0
    %590 = vmatpush1.msra.mxu0 %v382
    %591 = vmatprep.subr.mxu0 0.0
    %592 = vmatpush1.msra.mxu0 %v383
    %593 = vmatprep.subr.mxu0 0.0
    %594 = vmatpush1.msra.mxu0 %v384
    %595 = vmatprep.subr.mxu0 0.0
    %596 = vmatpush1.msra.mxu0 %v385
    %597 = vmatprep.subr.mxu0 0.0
    %598 = vmatpush1.msra.mxu0 %v386
    %599 = vmatprep.subr.mxu0 0.0
    %600 = vmatpush1.msra.mxu0 %v387
    %601 = vmatprep.subr.mxu0 0.0
    %602 = vmatpush1.msra.mxu0 %v388
    %603 = vmatprep.subr.mxu0 0.0
    %604 = vmatpush1.msra.mxu0 %v389
    %605 = vmatprep.subr.mxu0 0.0
    %606 = vmatpush1.msra.mxu0 %v390
    %607 = vmatprep.mubr.f32.mxu0 %v468
    %608 = vmatmul.mubr.f32.gmra.mrb[0].mxu0 %v542
    %v609 = vpop.f32.mrb[0].mxu0
    %v610 = vadd.f32 %v396, %v609
    %v611 = vpop.f32.mrb[0].mxu0
    %612 = vdwg.mxu0
    %v613 = vtanh.pop %v610
    %s614 = scalar_lea.vmem [#allocation3], 16
    %v615 = vld [vmem:[%s614] sm:$0xff]
    %616 = vmatprep.subr.mxu0 0.0
    %617 = vmatpush1.msra.mxu0 %v271
    %618 = vmatprep.subr.mxu0 0.0
    %619 = vmatpush1.msra.mxu0 %v272
    %620 = vmatprep.subr.mxu0 0.0
    %621 = vmatpush1.msra.mxu0 %v273
    %622 = vmatprep.subr.mxu0 0.0
    %623 = vmatpush1.msra.mxu0 %v274
    %624 = vmatprep.subr.mxu0 0.0
    %625 = vmatpush1.msra.mxu0 %v275
    %626 = vmatprep.subr.mxu0 0.0
    %627 = vmatpush1.msra.mxu0 %v276
    %628 = vmatprep.subr.mxu0 0.0
    %629 = vmatpush1.msra.mxu0 %v277
    %630 = vmatprep.subr.mxu0 0.0
    %631 = vmatpush1.msra.mxu0 %v278
    %632 = vmatprep.subr.mxu0 0.0
    %633 = vmatpush1.msra.mxu0 %v279
    %634 = vmatprep.subr.mxu0 0.0
    %635 = vmatpush1.msra.mxu0 %v280
    %636 = vmatprep.subr.mxu0 0.0
    %637 = vmatpush1.msra.mxu0 %v281
    %638 = vmatprep.subr.mxu0 0.0
    %639 = vmatpush1.msra.mxu0 %v282
    %640 = vmatprep.subr.mxu0 0.0
    %641 = vmatpush1.msra.mxu0 %v283
    %642 = vmatprep.subr.mxu0 0.0
    %643 = vmatpush1.msra.mxu0 %v284
    %644 = vmatprep.subr.mxu0 0.0
    %645 = vmatpush1.msra.mxu0 %v285
    %646 = vmatprep.subr.mxu0 0.0
    %647 = vmatpush1.msra.mxu0 %v286
    %648 = vmatprep.subr.mxu0 0.0
    %649 = vmatpush1.msra.mxu0 0.0
    %650 = vmatprep.subr.mxu0 0.0
    %651 = vmatpush1.msra.mxu0 0.0
    %652 = vmatprep.subr.mxu0 0.0
    %653 = vmatpush1.msra.mxu0 0.0
    %654 = vmatprep.subr.mxu0 0.0
    %655 = vmatpush1.msra.mxu0 0.0
    %656 = vmatprep.subr.mxu0 0.0
    %657 = vmatpush1.msra.mxu0 0.0
    %658 = vmatprep.subr.mxu0 0.0
    %659 = vmatpush1.msra.mxu0 0.0
    %660 = vmatprep.subr.mxu0 0.0
    %661 = vmatpush1.msra.mxu0 0.0
    %662 = vmatprep.subr.mxu0 0.0
    %663 = vmatpush1.msra.mxu0 0.0
    %664 = vmatprep.subr.mxu0 0.0
    %665 = vmatpush1.msra.mxu0 0.0
    %666 = vmatprep.subr.mxu0 0.0
    %667 = vmatpush1.msra.mxu0 0.0
    %668 = vmatprep.subr.mxu0 0.0
    %669 = vmatpush1.msra.mxu0 0.0
    %670 = vmatprep.subr.mxu0 0.0
    %671 = vmatpush1.msra.mxu0 0.0
    %672 = vmatprep.subr.mxu0 0.0
    %673 = vmatpush1.msra.mxu0 0.0
    %674 = vmatprep.subr.mxu0 0.0
    %675 = vmatpush1.msra.mxu0 0.0
    %676 = vmatprep.subr.mxu0 0.0
    %677 = vmatpush1.msra.mxu0 0.0
    %678 = vmatprep.subr.mxu0 0.0
    %679 = vmatpush1.msra.mxu0 0.0
    %680 = vmatprep.mubr.f32.mxu0 0.0
    %681 = vmatmul.mubr.f32.gmra.mrb[0].mxu0 %v542
    %v682 = vpop.f32.mrb[0].mxu0
    %v683 = vadd.f32 0.0, %v682
    %v684 = vpop.f32.mrb[0].mxu0
    %685 = vdwg.mxu0
    %v686 = vadd.f32 %v615, %v683
    %v687 = vtanh.pop %v686
    %688 = vmatprep.subr.mxu0 0.0
    %689 = vmatpush1.msra.mxu0 %v359
    %690 = vmatprep.subr.mxu0 0.0
    %691 = vmatpush1.msra.mxu0 %v360
    %692 = vmatprep.subr.mxu0 0.0
    %693 = vmatpush1.msra.mxu0 %v361
    %694 = vmatprep.subr.mxu0 0.0
    %695 = vmatpush1.msra.mxu0 %v362
    %696 = vmatprep.subr.mxu0 0.0
    %697 = vmatpush1.msra.mxu0 %v363
    %698 = vmatprep.subr.mxu0 0.0
    %699 = vmatpush1.msra.mxu0 %v364
    %700 = vmatprep.subr.mxu0 0.0
    %701 = vmatpush1.msra.mxu0 %v365
    %702 = vmatprep.subr.mxu0 0.0
    %703 = vmatpush1.msra.mxu0 %v366
    %704 = vmatprep.subr.mxu0 0.0
    %705 = vmatpush1.msra.mxu0 %v367
    %706 = vmatprep.subr.mxu0 0.0
    %707 = vmatpush1.msra.mxu0 %v368
    %708 = vmatprep.subr.mxu0 0.0
    %709 = vmatpush1.msra.mxu0 %v369
    %710 = vmatprep.subr.mxu0 0.0
    %711 = vmatpush1.msra.mxu0 %v370
    %712 = vmatprep.subr.mxu0 0.0
    %713 = vmatpush1.msra.mxu0 %v371
    %714 = vmatprep.subr.mxu0 0.0
    %715 = vmatpush1.msra.mxu0 %v372
    %716 = vmatprep.subr.mxu0 0.0
    %717 = vmatpush1.msra.mxu0 %v373
    %718 = vmatprep.subr.mxu0 0.0
    %719 = vmatpush1.msra.mxu0 %v374
    %720 = vmatprep.subr.mxu0 0.0
    %721 = vmatpush1.msra.mxu0 %v375
    %722 = vmatprep.subr.mxu0 0.0
    %723 = vmatpush1.msra.mxu0 %v376
    %724 = vmatprep.subr.mxu0 0.0
    %725 = vmatpush1.msra.mxu0 %v377
    %726 = vmatprep.subr.mxu0 0.0
    %727 = vmatpush1.msra.mxu0 %v378
    %728 = vmatprep.subr.mxu0 0.0
    %729 = vmatpush1.msra.mxu0 %v379
    %730 = vmatprep.subr.mxu0 0.0
    %731 = vmatpush1.msra.mxu0 %v380
    %732 = vmatprep.subr.mxu0 0.0
    %733 = vmatpush1.msra.mxu0 %v381
    %734 = vmatprep.subr.mxu0 0.0
    %735 = vmatpush1.msra.mxu0 %v382
    %736 = vmatprep.subr.mxu0 0.0
    %737 = vmatpush1.msra.mxu0 %v383
    %738 = vmatprep.subr.mxu0 0.0
    %739 = vmatpush1.msra.mxu0 %v384
    %740 = vmatprep.subr.mxu0 0.0
    %741 = vmatpush1.msra.mxu0 %v385
    %742 = vmatprep.subr.mxu0 0.0
    %743 = vmatpush1.msra.mxu0 %v386
    %744 = vmatprep.subr.mxu0 0.0
    %745 = vmatpush1.msra.mxu0 %v387
    %746 = vmatprep.subr.mxu0 0.0
    %747 = vmatpush1.msra.mxu0 %v388
    %748 = vmatprep.subr.mxu0 0.0
    %749 = vmatpush1.msra.mxu0 %v389
    %750 = vmatprep.subr.mxu0 0.0
    %751 = vmatpush1.msra.mxu0 %v390
    %752 = vmatprep.mubr.f32.mxu0 %v613
    %753 = vmatmul.mubr.f32.gmra.mrb[0].mxu0 %v687
    %v754 = vpop.f32.mrb[0].mxu0
    %v755 = vadd.f32 %v396, %v754
    %v756 = vpop.f32.mrb[0].mxu0
    %757 = vdwg.mxu0
    %v758 = vtanh.pop %v755
    %s759 = scalar_lea.vmem [#allocation3], 24
    %v760 = vld [vmem:[%s759] sm:$0xff]
    %761 = vmatprep.subr.mxu0 0.0
    %762 = vmatpush1.msra.mxu0 %v271
    %763 = vmatprep.subr.mxu0 0.0
    %764 = vmatpush1.msra.mxu0 %v272
    %765 = vmatprep.subr.mxu0 0.0
    %766 = vmatpush1.msra.mxu0 %v273
    %767 = vmatprep.subr.mxu0 0.0
    %768 = vmatpush1.msra.mxu0 %v274
    %769 = vmatprep.subr.mxu0 0.0
    %770 = vmatpush1.msra.mxu0 %v275
    %771 = vmatprep.subr.mxu0 0.0
    %772 = vmatpush1.msra.mxu0 %v276
    %773 = vmatprep.subr.mxu0 0.0
    %774 = vmatpush1.msra.mxu0 %v277
    %775 = vmatprep.subr.mxu0 0.0
    %776 = vmatpush1.msra.mxu0 %v278
    %777 = vmatprep.subr.mxu0 0.0
    %778 = vmatpush1.msra.mxu0 %v279
    %779 = vmatprep.subr.mxu0 0.0
    %780 = vmatpush1.msra.mxu0 %v280
    %781 = vmatprep.subr.mxu0 0.0
    %782 = vmatpush1.msra.mxu0 %v281
    %783 = vmatprep.subr.mxu0 0.0
    %784 = vmatpush1.msra.mxu0 %v282
    %785 = vmatprep.subr.mxu0 0.0
    %786 = vmatpush1.msra.mxu0 %v283
    %787 = vmatprep.subr.mxu0 0.0
    %788 = vmatpush1.msra.mxu0 %v284
    %789 = vmatprep.subr.mxu0 0.0
    %790 = vmatpush1.msra.mxu0 %v285
    %791 = vmatprep.subr.mxu0 0.0
    %792 = vmatpush1.msra.mxu0 %v286
    %793 = vmatprep.subr.mxu0 0.0
    %794 = vmatpush1.msra.mxu0 0.0
    %795 = vmatprep.subr.mxu0 0.0
    %796 = vmatpush1.msra.mxu0 0.0
    %797 = vmatprep.subr.mxu0 0.0
    %798 = vmatpush1.msra.mxu0 0.0
    %799 = vmatprep.subr.mxu0 0.0
    %800 = vmatpush1.msra.mxu0 0.0
    %801 = vmatprep.subr.mxu0 0.0
    %802 = vmatpush1.msra.mxu0 0.0
    %803 = vmatprep.subr.mxu0 0.0
    %804 = vmatpush1.msra.mxu0 0.0
    %805 = vmatprep.subr.mxu0 0.0
    %806 = vmatpush1.msra.mxu0 0.0
    %807 = vmatprep.subr.mxu0 0.0
    %808 = vmatpush1.msra.mxu0 0.0
    %809 = vmatprep.subr.mxu0 0.0
    %810 = vmatpush1.msra.mxu0 0.0
    %811 = vmatprep.subr.mxu0 0.0
    %812 = vmatpush1.msra.mxu0 0.0
    %813 = vmatprep.subr.mxu0 0.0
    %814 = vmatpush1.msra.mxu0 0.0
    %815 = vmatprep.subr.mxu0 0.0
    %816 = vmatpush1.msra.mxu0 0.0
    %817 = vmatprep.subr.mxu0 0.0
    %818 = vmatpush1.msra.mxu0 0.0
    %819 = vmatprep.subr.mxu0 0.0
    %820 = vmatpush1.msra.mxu0 0.0
    %821 = vmatprep.subr.mxu0 0.0
    %822 = vmatpush1.msra.mxu0 0.0
    %823 = vmatprep.subr.mxu0 0.0
    %824 = vmatpush1.msra.mxu0 0.0
    %825 = vmatprep.mubr.f32.mxu0 0.0
    %826 = vmatmul.mubr.f32.gmra.mrb[0].mxu0 %v687
    %v827 = vpop.f32.mrb[0].mxu0
    %v828 = vadd.f32 0.0, %v827
    %v829 = vpop.f32.mrb[0].mxu0
    %830 = vdwg.mxu0
    %v831 = vadd.f32 %v760, %v828
    %v832 = vtanh.pop %v831
    %833 = vmatprep.subr.mxu0 0.0
    %834 = vmatpush1.msra.mxu0 %v359
    %835 = vmatprep.subr.mxu0 0.0
    %836 = vmatpush1.msra.mxu0 %v360
    %837 = vmatprep.subr.mxu0 0.0
    %838 = vmatpush1.msra.mxu0 %v361
    %839 = vmatprep.subr.mxu0 0.0
    %840 = vmatpush1.msra.mxu0 %v362
    %841 = vmatprep.subr.mxu0 0.0
    %842 = vmatpush1.msra.mxu0 %v363
    %843 = vmatprep.subr.mxu0 0.0
    %844 = vmatpush1.msra.mxu0 %v364
    %845 = vmatprep.subr.mxu0 0.0
    %846 = vmatpush1.msra.mxu0 %v365
    %847 = vmatprep.subr.mxu0 0.0
    %848 = vmatpush1.msra.mxu0 %v366
    %849 = vmatprep.subr.mxu0 0.0
    %850 = vmatpush1.msra.mxu0 %v367
    %851 = vmatprep.subr.mxu0 0.0
    %852 = vmatpush1.msra.mxu0 %v368
    %853 = vmatprep.subr.mxu0 0.0
    %854 = vmatpush1.msra.mxu0 %v369
    %855 = vmatprep.subr.mxu0 0.0
    %856 = vmatpush1.msra.mxu0 %v370
    %857 = vmatprep.subr.mxu0 0.0
    %858 = vmatpush1.msra.mxu0 %v371
    %859 = vmatprep.subr.mxu0 0.0
    %860 = vmatpush1.msra.mxu0 %v372
    %861 = vmatprep.subr.mxu0 0.0
    %862 = vmatpush1.msra.mxu0 %v373
    %863 = vmatprep.subr.mxu0 0.0
    %864 = vmatpush1.msra.mxu0 %v374
    %865 = vmatprep.subr.mxu0 0.0
    %866 = vmatpush1.msra.mxu0 %v375
    %867 = vmatprep.subr.mxu0 0.0
    %868 = vmatpush1.msra.mxu0 %v376
    %869 = vmatprep.subr.mxu0 0.0
    %870 = vmatpush1.msra.mxu0 %v377
    %871 = vmatprep.subr.mxu0 0.0
    %872 = vmatpush1.msra.mxu0 %v378
    %873 = vmatprep.subr.mxu0 0.0
    %874 = vmatpush1.msra.mxu0 %v379
    %875 = vmatprep.subr.mxu0 0.0
    %876 = vmatpush1.msra.mxu0 %v380
    %877 = vmatprep.subr.mxu0 0.0
    %878 = vmatpush1.msra.mxu0 %v381
    %879 = vmatprep.subr.mxu0 0.0
    %880 = vmatpush1.msra.mxu0 %v382
    %881 = vmatprep.subr.mxu0 0.0
    %882 = vmatpush1.msra.mxu0 %v383
    %883 = vmatprep.subr.mxu0 0.0
    %884 = vmatpush1.msra.mxu0 %v384
    %885 = vmatprep.subr.mxu0 0.0
    %886 = vmatpush1.msra.mxu0 %v385
    %887 = vmatprep.subr.mxu0 0.0
    %888 = vmatpush1.msra.mxu0 %v386
    %889 = vmatprep.subr.mxu0 0.0
    %890 = vmatpush1.msra.mxu0 %v387
    %891 = vmatprep.subr.mxu0 0.0
    %892 = vmatpush1.msra.mxu0 %v388
    %893 = vmatprep.subr.mxu0 0.0
    %894 = vmatpush1.msra.mxu0 %v389
    %895 = vmatprep.subr.mxu0 0.0
    %896 = vmatpush1.msra.mxu0 %v390
    %897 = vmatprep.mubr.f32.mxu0 %v758
    %898 = vmatmul.mubr.f32.gmra.mrb[0].mxu0 %v832
    %v899 = vpop.f32.mrb[0].mxu0
    %v900 = vadd.f32 %v396, %v899
    %v901 = vpop.f32.mrb[0].mxu0
    %902 = vdwg.mxu0
    %v903 = vtanh.pop %v900
    %s904 = scalar_lea.vmem [#allocation3], 32
    %v905 = vld [vmem:[%s904] sm:$0xff]
    %906 = vmatprep.subr.mxu0 0.0
    %907 = vmatpush1.msra.mxu0 %v271
    %908 = vmatprep.subr.mxu0 0.0
    %909 = vmatpush1.msra.mxu0 %v272
    %910 = vmatprep.subr.mxu0 0.0
    %911 = vmatpush1.msra.mxu0 %v273
    %912 = vmatprep.subr.mxu0 0.0
    %913 = vmatpush1.msra.mxu0 %v274
    %914 = vmatprep.subr.mxu0 0.0
    %915 = vmatpush1.msra.mxu0 %v275
    %916 = vmatprep.subr.mxu0 0.0
    %917 = vmatpush1.msra.mxu0 %v276
    %918 = vmatprep.subr.mxu0 0.0
    %919 = vmatpush1.msra.mxu0 %v277
    %920 = vmatprep.subr.mxu0 0.0
    %921 = vmatpush1.msra.mxu0 %v278
    %922 = vmatprep.subr.mxu0 0.0
    %923 = vmatpush1.msra.mxu0 %v279
    %924 = vmatprep.subr.mxu0 0.0
    %925 = vmatpush1.msra.mxu0 %v280
    %926 = vmatprep.subr.mxu0 0.0
    %927 = vmatpush1.msra.mxu0 %v281
    %928 = vmatprep.subr.mxu0 0.0
    %929 = vmatpush1.msra.mxu0 %v282
    %930 = vmatprep.subr.mxu0 0.0
    %931 = vmatpush1.msra.mxu0 %v283
    %932 = vmatprep.subr.mxu0 0.0
    %933 = vmatpush1.msra.mxu0 %v284
    %934 = vmatprep.subr.mxu0 0.0
    %935 = vmatpush1.msra.mxu0 %v285
    %936 = vmatprep.subr.mxu0 0.0
    %937 = vmatpush1.msra.mxu0 %v286
    %938 = vmatprep.subr.mxu0 0.0
    %939 = vmatpush1.msra.mxu0 0.0
    %940 = vmatprep.subr.mxu0 0.0
    %941 = vmatpush1.msra.mxu0 0.0
    %942 = vmatprep.subr.mxu0 0.0
    %943 = vmatpush1.msra.mxu0 0.0
    %944 = vmatprep.subr.mxu0 0.0
    %945 = vmatpush1.msra.mxu0 0.0
    %946 = vmatprep.subr.mxu0 0.0
    %947 = vmatpush1.msra.mxu0 0.0
    %948 = vmatprep.subr.mxu0 0.0
    %949 = vmatpush1.msra.mxu0 0.0
    %950 = vmatprep.subr.mxu0 0.0
    %951 = vmatpush1.msra.mxu0 0.0
    %952 = vmatprep.subr.mxu0 0.0
    %953 = vmatpush1.msra.mxu0 0.0
    %954 = vmatprep.subr.mxu0 0.0
    %955 = vmatpush1.msra.mxu0 0.0
    %956 = vmatprep.subr.mxu0 0.0
    %957 = vmatpush1.msra.mxu0 0.0
    %958 = vmatprep.subr.mxu0 0.0
    %959 = vmatpush1.msra.mxu0 0.0
    %960 = vmatprep.subr.mxu0 0.0
    %961 = vmatpush1.msra.mxu0 0.0
    %962 = vmatprep.subr.mxu0 0.0
    %963 = vmatpush1.msra.mxu0 0.0
    %964 = vmatprep.subr.mxu0 0.0
    %965 = vmatpush1.msra.mxu0 0.0
    %966 = vmatprep.subr.mxu0 0.0
    %967 = vmatpush1.msra.mxu0 0.0
    %968 = vmatprep.subr.mxu0 0.0
    %969 = vmatpush1.msra.mxu0 0.0
    %970 = vmatprep.mubr.f32.mxu0 0.0
    %971 = vmatmul.mubr.f32.gmra.mrb[0].mxu0 %v832
    %v972 = vpop.f32.mrb[0].mxu0
    %v973 = vadd.f32 0.0, %v972
    %v974 = vpop.f32.mrb[0].mxu0
    %975 = vdwg.mxu0
    %v976 = vadd.f32 %v905, %v973
    %v977 = vtanh.pop %v976
    %978 = vmatprep.subr.mxu0 0.0
    %979 = vmatpush1.msra.mxu0 %v359
    %980 = vmatprep.subr.mxu0 0.0
    %981 = vmatpush1.msra.mxu0 %v360
    %982 = vmatprep.subr.mxu0 0.0
    %983 = vmatpush1.msra.mxu0 %v361
    %984 = vmatprep.subr.mxu0 0.0
    %985 = vmatpush1.msra.mxu0 %v362
    %986 = vmatprep.subr.mxu0 0.0
    %987 = vmatpush1.msra.mxu0 %v363
    %988 = vmatprep.subr.mxu0 0.0
    %989 = vmatpush1.msra.mxu0 %v364
    %990 = vmatprep.subr.mxu0 0.0
    %991 = vmatpush1.msra.mxu0 %v365
    %992 = vmatprep.subr.mxu0 0.0
    %993 = vmatpush1.msra.mxu0 %v366
    %994 = vmatprep.subr.mxu0 0.0
    %995 = vmatpush1.msra.mxu0 %v367
    %996 = vmatprep.subr.mxu0 0.0
    %997 = vmatpush1.msra.mxu0 %v368
    %998 = vmatprep.subr.mxu0 0.0
    %999 = vmatpush1.msra.mxu0 %v369
    %1000 = vmatprep.subr.mxu0 0.0
    %1001 = vmatpush1.msra.mxu0 %v370
    %1002 = vmatprep.subr.mxu0 0.0
    %1003 = vmatpush1.msra.mxu0 %v371
    %1004 = vmatprep.subr.mxu0 0.0
    %1005 = vmatpush1.msra.mxu0 %v372
    %1006 = vmatprep.subr.mxu0 0.0
    %1007 = vmatpush1.msra.mxu0 %v373
    %1008 = vmatprep.subr.mxu0 0.0
    %1009 = vmatpush1.msra.mxu0 %v374
    %1010 = vmatprep.subr.mxu0 0.0
    %1011 = vmatpush1.msra.mxu0 %v375
    %1012 = vmatprep.subr.mxu0 0.0
    %1013 = vmatpush1.msra.mxu0 %v376
    %1014 = vmatprep.subr.mxu0 0.0
    %1015 = vmatpush1.msra.mxu0 %v377
    %1016 = vmatprep.subr.mxu0 0.0
    %1017 = vmatpush1.msra.mxu0 %v378
    %1018 = vmatprep.subr.mxu0 0.0
    %1019 = vmatpush1.msra.mxu0 %v379
    %1020 = vmatprep.subr.mxu0 0.0
    %1021 = vmatpush1.msra.mxu0 %v380
    %1022 = vmatprep.subr.mxu0 0.0
    %1023 = vmatpush1.msra.mxu0 %v381
    %1024 = vmatprep.subr.mxu0 0.0
    %1025 = vmatpush1.msra.mxu0 %v382
    %1026 = vmatprep.subr.mxu0 0.0
    %1027 = vmatpush1.msra.mxu0 %v383
    %1028 = vmatprep.subr.mxu0 0.0
    %1029 = vmatpush1.msra.mxu0 %v384
    %1030 = vmatprep.subr.mxu0 0.0
    %1031 = vmatpush1.msra.mxu0 %v385
    %1032 = vmatprep.subr.mxu0 0.0
    %1033 = vmatpush1.msra.mxu0 %v386
    %1034 = vmatprep.subr.mxu0 0.0
    %1035 = vmatpush1.msra.mxu0 %v387
    %1036 = vmatprep.subr.mxu0 0.0
    %1037 = vmatpush1.msra.mxu0 %v388
    %1038 = vmatprep.subr.mxu0 0.0
    %1039 = vmatpush1.msra.mxu0 %v389
    %1040 = vmatprep.subr.mxu0 0.0
    %1041 = vmatpush1.msra.mxu0 %v390
    %1042 = vmatprep.mubr.f32.mxu0 %v903
    %1043 = vmatmul.mubr.f32.gmra.mrb[0].mxu0 %v977
    %v1044 = vpop.f32.mrb[0].mxu0
    %v1045 = vadd.f32 %v396, %v1044
    %v1046 = vpop.f32.mrb[0].mxu0
    %1047 = vdwg.mxu0
    %v1048 = vtanh.pop %v1045
    %s1049 = scalar_lea.vmem [#allocation3], 40
    %v1050 = vld [vmem:[%s1049] sm:$0xff]
    %1051 = vmatprep.subr.mxu0 0.0
    %1052 = vmatpush1.msra.mxu0 %v271
    %1053 = vmatprep.subr.mxu0 0.0
    %1054 = vmatpush1.msra.mxu0 %v272
    %1055 = vmatprep.subr.mxu0 0.0
    %1056 = vmatpush1.msra.mxu0 %v273
    %1057 = vmatprep.subr.mxu0 0.0
    %1058 = vmatpush1.msra.mxu0 %v274
    %1059 = vmatprep.subr.mxu0 0.0
    %1060 = vmatpush1.msra.mxu0 %v275
    %1061 = vmatprep.subr.mxu0 0.0
    %1062 = vmatpush1.msra.mxu0 %v276
    %1063 = vmatprep.subr.mxu0 0.0
    %1064 = vmatpush1.msra.mxu0 %v277
    %1065 = vmatprep.subr.mxu0 0.0
    %1066 = vmatpush1.msra.mxu0 %v278
    %1067 = vmatprep.subr.mxu0 0.0
    %1068 = vmatpush1.msra.mxu0 %v279
    %1069 = vmatprep.subr.mxu0 0.0
    %1070 = vmatpush1.msra.mxu0 %v280
    %1071 = vmatprep.subr.mxu0 0.0
    %1072 = vmatpush1.msra.mxu0 %v281
    %1073 = vmatprep.subr.mxu0 0.0
    %1074 = vmatpush1.msra.mxu0 %v282
    %1075 = vmatprep.subr.mxu0 0.0
    %1076 = vmatpush1.msra.mxu0 %v283
    %1077 = vmatprep.subr.mxu0 0.0
    %1078 = vmatpush1.msra.mxu0 %v284
    %1079 = vmatprep.subr.mxu0 0.0
    %1080 = vmatpush1.msra.mxu0 %v285
    %1081 = vmatprep.subr.mxu0 0.0
    %1082 = vmatpush1.msra.mxu0 %v286
    %1083 = vmatprep.subr.mxu0 0.0
    %1084 = vmatpush1.msra.mxu0 0.0
    %1085 = vmatprep.subr.mxu0 0.0
    %1086 = vmatpush1.msra.mxu0 0.0
    %1087 = vmatprep.subr.mxu0 0.0
    %1088 = vmatpush1.msra.mxu0 0.0
    %1089 = vmatprep.subr.mxu0 0.0
    %1090 = vmatpush1.msra.mxu0 0.0
    %1091 = vmatprep.subr.mxu0 0.0
    %1092 = vmatpush1.msra.mxu0 0.0
    %1093 = vmatprep.subr.mxu0 0.0
    %1094 = vmatpush1.msra.mxu0 0.0
    %1095 = vmatprep.subr.mxu0 0.0
    %1096 = vmatpush1.msra.mxu0 0.0
    %1097 = vmatprep.subr.mxu0 0.0
    %1098 = vmatpush1.msra.mxu0 0.0
    %1099 = vmatprep.subr.mxu0 0.0
    %1100 = vmatpush1.msra.mxu0 0.0
    %1101 = vmatprep.subr.mxu0 0.0
    %1102 = vmatpush1.msra.mxu0 0.0
    %1103 = vmatprep.subr.mxu0 0.0
    %1104 = vmatpush1.msra.mxu0 0.0
    %1105 = vmatprep.subr.mxu0 0.0
    %1106 = vmatpush1.msra.mxu0 0.0
    %1107 = vmatprep.subr.mxu0 0.0
    %1108 = vmatpush1.msra.mxu0 0.0
    %1109 = vmatprep.subr.mxu0 0.0
    %1110 = vmatpush1.msra.mxu0 0.0
    %1111 = vmatprep.subr.mxu0 0.0
    %1112 = vmatpush1.msra.mxu0 0.0
    %1113 = vmatprep.subr.mxu0 0.0
    %1114 = vmatpush1.msra.mxu0 0.0
    %1115 = vmatprep.mubr.f32.mxu0 0.0
    %1116 = vmatmul.mubr.f32.gmra.mrb[0].mxu0 %v977
    %v1117 = vpop.f32.mrb[0].mxu0
    %v1118 = vadd.f32 0.0, %v1117
    %v1119 = vpop.f32.mrb[0].mxu0
    %1120 = vdwg.mxu0
    %v1121 = vadd.f32 %v1050, %v1118
    %v1122 = vtanh.pop %v1121
    %1123 = vmatprep.subr.mxu0 0.0
    %1124 = vmatpush1.msra.mxu0 %v359
    %1125 = vmatprep.subr.mxu0 0.0
    %1126 = vmatpush1.msra.mxu0 %v360
    %1127 = vmatprep.subr.mxu0 0.0
    %1128 = vmatpush1.msra.mxu0 %v361
    %1129 = vmatprep.subr.mxu0 0.0
    %1130 = vmatpush1.msra.mxu0 %v362
    %1131 = vmatprep.subr.mxu0 0.0
    %1132 = vmatpush1.msra.mxu0 %v363
    %1133 = vmatprep.subr.mxu0 0.0
    %1134 = vmatpush1.msra.mxu0 %v364
    %1135 = vmatprep.subr.mxu0 0.0
    %1136 = vmatpush1.msra.mxu0 %v365
    %1137 = vmatprep.subr.mxu0 0.0
    %1138 = vmatpush1.msra.mxu0 %v366
    %1139 = vmatprep.subr.mxu0 0.0
    %1140 = vmatpush1.msra.mxu0 %v367
    %1141 = vmatprep.subr.mxu0 0.0
    %1142 = vmatpush1.msra.mxu0 %v368
    %1143 = vmatprep.subr.mxu0 0.0
    %1144 = vmatpush1.msra.mxu0 %v369
    %1145 = vmatprep.subr.mxu0 0.0
    %1146 = vmatpush1.msra.mxu0 %v370
    %1147 = vmatprep.subr.mxu0 0.0
    %1148 = vmatpush1.msra.mxu0 %v371
    %1149 = vmatprep.subr.mxu0 0.0
    %1150 = vmatpush1.msra.mxu0 %v372
    %1151 = vmatprep.subr.mxu0 0.0
    %1152 = vmatpush1.msra.mxu0 %v373
    %1153 = vmatprep.subr.mxu0 0.0
    %1154 = vmatpush1.msra.mxu0 %v374
    %1155 = vmatprep.subr.mxu0 0.0
    %1156 = vmatpush1.msra.mxu0 %v375
    %1157 = vmatprep.subr.mxu0 0.0
    %1158 = vmatpush1.msra.mxu0 %v376
    %1159 = vmatprep.subr.mxu0 0.0
    %1160 = vmatpush1.msra.mxu0 %v377
    %1161 = vmatprep.subr.mxu0 0.0
    %1162 = vmatpush1.msra.mxu0 %v378
    %1163 = vmatprep.subr.mxu0 0.0
    %1164 = vmatpush1.msra.mxu0 %v379
    %1165 = vmatprep.subr.mxu0 0.0
    %1166 = vmatpush1.msra.mxu0 %v380
    %1167 = vmatprep.subr.mxu0 0.0
    %1168 = vmatpush1.msra.mxu0 %v381
    %1169 = vmatprep.subr.mxu0 0.0
    %1170 = vmatpush1.msra.mxu0 %v382
    %1171 = vmatprep.subr.mxu0 0.0
    %1172 = vmatpush1.msra.mxu0 %v383
    %1173 = vmatprep.subr.mxu0 0.0
    %1174 = vmatpush1.msra.mxu0 %v384
    %1175 = vmatprep.subr.mxu0 0.0
    %1176 = vmatpush1.msra.mxu0 %v385
    %1177 = vmatprep.subr.mxu0 0.0
    %1178 = vmatpush1.msra.mxu0 %v386
    %1179 = vmatprep.subr.mxu0 0.0
    %1180 = vmatpush1.msra.mxu0 %v387
    %1181 = vmatprep.subr.mxu0 0.0
    %1182 = vmatpush1.msra.mxu0 %v388
    %1183 = vmatprep.subr.mxu0 0.0
    %1184 = vmatpush1.msra.mxu0 %v389
    %1185 = vmatprep.subr.mxu0 0.0
    %1186 = vmatpush1.msra.mxu0 %v390
    %1187 = vmatprep.mubr.f32.mxu0 %v1048
    %1188 = vmatmul.mubr.f32.gmra.mrb[0].mxu0 %v1122
    %v1189 = vpop.f32.mrb[0].mxu0
    %v1190 = vadd.f32 %v396, %v1189
    %v1191 = vpop.f32.mrb[0].mxu0
    %1192 = vdwg.mxu0
    %v1193 = vtanh.pop %v1190
    %s1194 = scalar_lea.vmem [#allocation3], 48
    %v1195 = vld [vmem:[%s1194] sm:$0xff]
    %1196 = vmatprep.subr.mxu0 0.0
    %1197 = vmatpush1.msra.mxu0 %v271
    %1198 = vmatprep.subr.mxu0 0.0
    %1199 = vmatpush1.msra.mxu0 %v272
    %1200 = vmatprep.subr.mxu0 0.0
    %1201 = vmatpush1.msra.mxu0 %v273
    %1202 = vmatprep.subr.mxu0 0.0
    %1203 = vmatpush1.msra.mxu0 %v274
    %1204 = vmatprep.subr.mxu0 0.0
    %1205 = vmatpush1.msra.mxu0 %v275
    %1206 = vmatprep.subr.mxu0 0.0
    %1207 = vmatpush1.msra.mxu0 %v276
    %1208 = vmatprep.subr.mxu0 0.0
    %1209 = vmatpush1.msra.mxu0 %v277
    %1210 = vmatprep.subr.mxu0 0.0
    %1211 = vmatpush1.msra.mxu0 %v278
    %1212 = vmatprep.subr.mxu0 0.0
    %1213 = vmatpush1.msra.mxu0 %v279
    %1214 = vmatprep.subr.mxu0 0.0
    %1215 = vmatpush1.msra.mxu0 %v280
    %1216 = vmatprep.subr.mxu0 0.0
    %1217 = vmatpush1.msra.mxu0 %v281
    %1218 = vmatprep.subr.mxu0 0.0
    %1219 = vmatpush1.msra.mxu0 %v282
    %1220 = vmatprep.subr.mxu0 0.0
    %1221 = vmatpush1.msra.mxu0 %v283
    %1222 = vmatprep.subr.mxu0 0.0
    %1223 = vmatpush1.msra.mxu0 %v284
    %1224 = vmatprep.subr.mxu0 0.0
    %1225 = vmatpush1.msra.mxu0 %v285
    %1226 = vmatprep.subr.mxu0 0.0
    %1227 = vmatpush1.msra.mxu0 %v286
    %1228 = vmatprep.subr.mxu0 0.0
    %1229 = vmatpush1.msra.mxu0 0.0
    %1230 = vmatprep.subr.mxu0 0.0
    %1231 = vmatpush1.msra.mxu0 0.0
    %1232 = vmatprep.subr.mxu0 0.0
    %1233 = vmatpush1.msra.mxu0 0.0
    %1234 = vmatprep.subr.mxu0 0.0
    %1235 = vmatpush1.msra.mxu0 0.0
    %1236 = vmatprep.subr.mxu0 0.0
    %1237 = vmatpush1.msra.mxu0 0.0
    %1238 = vmatprep.subr.mxu0 0.0
    %1239 = vmatpush1.msra.mxu0 0.0
    %1240 = vmatprep.subr.mxu0 0.0
    %1241 = vmatpush1.msra.mxu0 0.0
    %1242 = vmatprep.subr.mxu0 0.0
    %1243 = vmatpush1.msra.mxu0 0.0
    %1244 = vmatprep.subr.mxu0 0.0
    %1245 = vmatpush1.msra.mxu0 0.0
    %1246 = vmatprep.subr.mxu0 0.0
    %1247 = vmatpush1.msra.mxu0 0.0
    %1248 = vmatprep.subr.mxu0 0.0
    %1249 = vmatpush1.msra.mxu0 0.0
    %1250 = vmatprep.subr.mxu0 0.0
    %1251 = vmatpush1.msra.mxu0 0.0
    %1252 = vmatprep.subr.mxu0 0.0
    %1253 = vmatpush1.msra.mxu0 0.0
    %1254 = vmatprep.subr.mxu0 0.0
    %1255 = vmatpush1.msra.mxu0 0.0
    %1256 = vmatprep.subr.mxu0 0.0
    %1257 = vmatpush1.msra.mxu0 0.0
    %1258 = vmatprep.subr.mxu0 0.0
    %1259 = vmatpush1.msra.mxu0 0.0
    %1260 = vmatprep.mubr.f32.mxu0 0.0
    %1261 = vmatmul.mubr.f32.gmra.mrb[0].mxu0 %v1122
    %v1262 = vpop.f32.mrb[0].mxu0
    %v1263 = vadd.f32 0.0, %v1262
    %v1264 = vpop.f32.mrb[0].mxu0
    %1265 = vdwg.mxu0
    %v1266 = vadd.f32 %v1195, %v1263
    %v1267 = vtanh.pop %v1266
    %1268 = vmatprep.subr.mxu0 0.0
    %1269 = vmatpush1.msra.mxu0 %v359
    %1270 = vmatprep.subr.mxu0 0.0
    %1271 = vmatpush1.msra.mxu0 %v360
    %1272 = vmatprep.subr.mxu0 0.0
    %1273 = vmatpush1.msra.mxu0 %v361
    %1274 = vmatprep.subr.mxu0 0.0
    %1275 = vmatpush1.msra.mxu0 %v362
    %1276 = vmatprep.subr.mxu0 0.0
    %1277 = vmatpush1.msra.mxu0 %v363
    %1278 = vmatprep.subr.mxu0 0.0
    %1279 = vmatpush1.msra.mxu0 %v364
    %1280 = vmatprep.subr.mxu0 0.0
    %1281 = vmatpush1.msra.mxu0 %v365
    %1282 = vmatprep.subr.mxu0 0.0
    %1283 = vmatpush1.msra.mxu0 %v366
    %1284 = vmatprep.subr.mxu0 0.0
    %1285 = vmatpush1.msra.mxu0 %v367
    %1286 = vmatprep.subr.mxu0 0.0
    %1287 = vmatpush1.msra.mxu0 %v368
    %1288 = vmatprep.subr.mxu0 0.0
    %1289 = vmatpush1.msra.mxu0 %v369
    %1290 = vmatprep.subr.mxu0 0.0
    %1291 = vmatpush1.msra.mxu0 %v370
    %1292 = vmatprep.subr.mxu0 0.0
    %1293 = vmatpush1.msra.mxu0 %v371
    %1294 = vmatprep.subr.mxu0 0.0
    %1295 = vmatpush1.msra.mxu0 %v372
    %1296 = vmatprep.subr.mxu0 0.0
    %1297 = vmatpush1.msra.mxu0 %v373
    %1298 = vmatprep.subr.mxu0 0.0
    %1299 = vmatpush1.msra.mxu0 %v374
    %1300 = vmatprep.subr.mxu0 0.0
    %1301 = vmatpush1.msra.mxu0 %v375
    %1302 = vmatprep.subr.mxu0 0.0
    %1303 = vmatpush1.msra.mxu0 %v376
    %1304 = vmatprep.subr.mxu0 0.0
    %1305 = vmatpush1.msra.mxu0 %v377
    %1306 = vmatprep.subr.mxu0 0.0
    %1307 = vmatpush1.msra.mxu0 %v378
    %1308 = vmatprep.subr.mxu0 0.0
    %1309 = vmatpush1.msra.mxu0 %v379
    %1310 = vmatprep.subr.mxu0 0.0
    %1311 = vmatpush1.msra.mxu0 %v380
    %1312 = vmatprep.subr.mxu0 0.0
    %1313 = vmatpush1.msra.mxu0 %v381
    %1314 = vmatprep.subr.mxu0 0.0
    %1315 = vmatpush1.msra.mxu0 %v382
    %1316 = vmatprep.subr.mxu0 0.0
    %1317 = vmatpush1.msra.mxu0 %v383
    %1318 = vmatprep.subr.mxu0 0.0
    %1319 = vmatpush1.msra.mxu0 %v384
    %1320 = vmatprep.subr.mxu0 0.0
    %1321 = vmatpush1.msra.mxu0 %v385
    %1322 = vmatprep.subr.mxu0 0.0
    %1323 = vmatpush1.msra.mxu0 %v386
    %1324 = vmatprep.subr.mxu0 0.0
    %1325 = vmatpush1.msra.mxu0 %v387
    %1326 = vmatprep.subr.mxu0 0.0
    %1327 = vmatpush1.msra.mxu0 %v388
    %1328 = vmatprep.subr.mxu0 0.0
    %1329 = vmatpush1.msra.mxu0 %v389
    %1330 = vmatprep.subr.mxu0 0.0
    %1331 = vmatpush1.msra.mxu0 %v390
    %1332 = vmatprep.mubr.f32.mxu0 %v1193
    %1333 = vmatmul.mubr.f32.gmra.mrb[0].mxu0 %v1267
    %v1334 = vpop.f32.mrb[0].mxu0
    %v1335 = vadd.f32 %v396, %v1334
    %v1336 = vpop.f32.mrb[0].mxu0
    %1337 = vdwg.mxu0
    %v1338 = vtanh.pop %v1335
    %s1339 = scalar_lea.vmem [#allocation3], 56
    %v1340 = vld [vmem:[%s1339] sm:$0xff]
    %1341 = vmatprep.subr.mxu0 0.0
    %1342 = vmatpush1.msra.mxu0 %v271
    %1343 = vmatprep.subr.mxu0 0.0
    %1344 = vmatpush1.msra.mxu0 %v272
    %1345 = vmatprep.subr.mxu0 0.0
    %1346 = vmatpush1.msra.mxu0 %v273
    %1347 = vmatprep.subr.mxu0 0.0
    %1348 = vmatpush1.msra.mxu0 %v274
    %1349 = vmatprep.subr.mxu0 0.0
    %1350 = vmatpush1.msra.mxu0 %v275
    %1351 = vmatprep.subr.mxu0 0.0
    %1352 = vmatpush1.msra.mxu0 %v276
    %1353 = vmatprep.subr.mxu0 0.0
    %1354 = vmatpush1.msra.mxu0 %v277
    %1355 = vmatprep.subr.mxu0 0.0
    %1356 = vmatpush1.msra.mxu0 %v278
    %1357 = vmatprep.subr.mxu0 0.0
    %1358 = vmatpush1.msra.mxu0 %v279
    %1359 = vmatprep.subr.mxu0 0.0
    %1360 = vmatpush1.msra.mxu0 %v280
    %1361 = vmatprep.subr.mxu0 0.0
    %1362 = vmatpush1.msra.mxu0 %v281
    %1363 = vmatprep.subr.mxu0 0.0
    %1364 = vmatpush1.msra.mxu0 %v282
    %1365 = vmatprep.subr.mxu0 0.0
    %1366 = vmatpush1.msra.mxu0 %v283
    %1367 = vmatprep.subr.mxu0 0.0
    %1368 = vmatpush1.msra.mxu0 %v284
    %1369 = vmatprep.subr.mxu0 0.0
    %1370 = vmatpush1.msra.mxu0 %v285
    %1371 = vmatprep.subr.mxu0 0.0
    %1372 = vmatpush1.msra.mxu0 %v286
    %1373 = vmatprep.subr.mxu0 0.0
    %1374 = vmatpush1.msra.mxu0 0.0
    %1375 = vmatprep.subr.mxu0 0.0
    %1376 = vmatpush1.msra.mxu0 0.0
    %1377 = vmatprep.subr.mxu0 0.0
    %1378 = vmatpush1.msra.mxu0 0.0
    %1379 = vmatprep.subr.mxu0 0.0
    %1380 = vmatpush1.msra.mxu0 0.0
    %1381 = vmatprep.subr.mxu0 0.0
    %1382 = vmatpush1.msra.mxu0 0.0
    %1383 = vmatprep.subr.mxu0 0.0
    %1384 = vmatpush1.msra.mxu0 0.0
    %1385 = vmatprep.subr.mxu0 0.0
    %1386 = vmatpush1.msra.mxu0 0.0
    %1387 = vmatprep.subr.mxu0 0.0
    %1388 = vmatpush1.msra.mxu0 0.0
    %1389 = vmatprep.subr.mxu0 0.0
    %1390 = vmatpush1.msra.mxu0 0.0
    %1391 = vmatprep.subr.mxu0 0.0
    %1392 = vmatpush1.msra.mxu0 0.0
    %1393 = vmatprep.subr.mxu0 0.0
    %1394 = vmatpush1.msra.mxu0 0.0
    %1395 = vmatprep.subr.mxu0 0.0
    %1396 = vmatpush1.msra.mxu0 0.0
    %1397 = vmatprep.subr.mxu0 0.0
    %1398 = vmatpush1.msra.mxu0 0.0
    %1399 = vmatprep.subr.mxu0 0.0
    %1400 = vmatpush1.msra.mxu0 0.0
    %1401 = vmatprep.subr.mxu0 0.0
    %1402 = vmatpush1.msra.mxu0 0.0
    %1403 = vmatprep.subr.mxu0 0.0
    %1404 = vmatpush1.msra.mxu0 0.0
    %1405 = vmatprep.mubr.f32.mxu0 0.0
    %1406 = vmatmul.mubr.f32.gmra.mrb[0].mxu0 %v1267
    %v1407 = vpop.f32.mrb[0].mxu0
    %v1408 = vadd.f32 0.0, %v1407
    %v1409 = vpop.f32.mrb[0].mxu0
    %1410 = vdwg.mxu0
    %v1411 = vadd.f32 %v1340, %v1408
    %v1412 = vtanh.pop %v1411
    %1413 = vmatprep.subr.mxu0 0.0
    %1414 = vmatpush1.msra.mxu0 %v359
    %1415 = vmatprep.subr.mxu0 0.0
    %1416 = vmatpush1.msra.mxu0 %v360
    %1417 = vmatprep.subr.mxu0 0.0
    %1418 = vmatpush1.msra.mxu0 %v361
    %1419 = vmatprep.subr.mxu0 0.0
    %1420 = vmatpush1.msra.mxu0 %v362
    %1421 = vmatprep.subr.mxu0 0.0
    %1422 = vmatpush1.msra.mxu0 %v363
    %1423 = vmatprep.subr.mxu0 0.0
    %1424 = vmatpush1.msra.mxu0 %v364
    %1425 = vmatprep.subr.mxu0 0.0
    %1426 = vmatpush1.msra.mxu0 %v365
    %1427 = vmatprep.subr.mxu0 0.0
    %1428 = vmatpush1.msra.mxu0 %v366
    %1429 = vmatprep.subr.mxu0 0.0
    %1430 = vmatpush1.msra.mxu0 %v367
    %1431 = vmatprep.subr.mxu0 0.0
    %1432 = vmatpush1.msra.mxu0 %v368
    %1433 = vmatprep.subr.mxu0 0.0
    %1434 = vmatpush1.msra.mxu0 %v369
    %1435 = vmatprep.subr.mxu0 0.0
    %1436 = vmatpush1.msra.mxu0 %v370
    %1437 = vmatprep.subr.mxu0 0.0
    %1438 = vmatpush1.msra.mxu0 %v371
    %1439 = vmatprep.subr.mxu0 0.0
    %1440 = vmatpush1.msra.mxu0 %v372
    %1441 = vmatprep.subr.mxu0 0.0
    %1442 = vmatpush1.msra.mxu0 %v373
    %1443 = vmatprep.subr.mxu0 0.0
    %1444 = vmatpush1.msra.mxu0 %v374
    %1445 = vmatprep.subr.mxu0 0.0
    %1446 = vmatpush1.msra.mxu0 %v375
    %1447 = vmatprep.subr.mxu0 0.0
    %1448 = vmatpush1.msra.mxu0 %v376
    %1449 = vmatprep.subr.mxu0 0.0
    %1450 = vmatpush1.msra.mxu0 %v377
    %1451 = vmatprep.subr.mxu0 0.0
    %1452 = vmatpush1.msra.mxu0 %v378
    %1453 = vmatprep.subr.mxu0 0.0
    %1454 = vmatpush1.msra.mxu0 %v379
    %1455 = vmatprep.subr.mxu0 0.0
    %1456 = vmatpush1.msra.mxu0 %v380
    %1457 = vmatprep.subr.mxu0 0.0
    %1458 = vmatpush1.msra.mxu0 %v381
    %1459 = vmatprep.subr.mxu0 0.0
    %1460 = vmatpush1.msra.mxu0 %v382
    %1461 = vmatprep.subr.mxu0 0.0
    %1462 = vmatpush1.msra.mxu0 %v383
    %1463 = vmatprep.subr.mxu0 0.0
    %1464 = vmatpush1.msra.mxu0 %v384
    %1465 = vmatprep.subr.mxu0 0.0
    %1466 = vmatpush1.msra.mxu0 %v385
    %1467 = vmatprep.subr.mxu0 0.0
    %1468 = vmatpush1.msra.mxu0 %v386
    %1469 = vmatprep.subr.mxu0 0.0
    %1470 = vmatpush1.msra.mxu0 %v387
    %1471 = vmatprep.subr.mxu0 0.0
    %1472 = vmatpush1.msra.mxu0 %v388
    %1473 = vmatprep.subr.mxu0 0.0
    %1474 = vmatpush1.msra.mxu0 %v389
    %1475 = vmatprep.subr.mxu0 0.0
    %1476 = vmatpush1.msra.mxu0 %v390
    %1477 = vmatprep.mubr.f32.mxu0 %v1338
    %1478 = vmatmul.mubr.f32.gmra.mrb[0].mxu0 %v1412
    %v1479 = vpop.f32.mrb[0].mxu0
    %v1480 = vadd.f32 %v396, %v1479
    %v1481 = vpop.f32.mrb[0].mxu0
    %1482 = vdwg.mxu0
    %v1483 = vtanh.pop %v1480
    %1484 = vst [vmem:[#allocation2] sm:$0xff] %v1412
    %1485 = vst [vmem:[%s268] sm:$0xff] %v1483
    %v1486 = vld [vmem:[#allocation13] sm:$0xff]
    %v1487 = vld [vmem:[#allocation13 + $0x8] sm:$0xff]
    %v1488 = vld [vmem:[#allocation13 + $0x10] sm:$0xff]
    %v1489 = vld [vmem:[#allocation13 + $0x18] sm:$0xff]
    %v1490 = vld [vmem:[#allocation13 + $0x20] sm:$0xff]
    %v1491 = vld [vmem:[#allocation13 + $0x28] sm:$0xff]
    %v1492 = vld [vmem:[#allocation13 + $0x30] sm:$0xff]
    %v1493 = vld [vmem:[#allocation13 + $0x38] sm:$0xff]
    %v1494 = vld [vmem:[#allocation13 + $0x40] sm:$0xff]
    %v1495 = vld [vmem:[#allocation13 + $0x48] sm:$0xff]
    %v1496 = vld [vmem:[#allocation13 + $0x50] sm:$0xff]
    %v1497 = vld [vmem:[#allocation13 + $0x58] sm:$0xff]
    %v1498 = vld [vmem:[#allocation13 + $0x60] sm:$0xff]
    %v1499 = vld [vmem:[#allocation13 + $0x68] sm:$0xff]
    %v1500 = vld [vmem:[#allocation13 + $0x70] sm:$0xff]
    %v1501 = vld [vmem:[#allocation13 + $0x78] sm:$0xff]
    %v1502 = vld [vmem:[%s8] sm:$0x1]
    %v1504 = vlaneseq
    %v1505 = vshrl.u32 %v1504, 7
    %v1506 = vsub.s32 0, %v1505
    %v1507 = vrot.slane %v1502, %v1506
    %1509 = vmatprep.subr.mxu0 0.0
    %1510 = vmatpush1.msra.mxu0 %v1486
    %1511 = vmatprep.subr.mxu0 0.0
    %1512 = vmatpush1.msra.mxu0 %v1487
    %1513 = vmatprep.subr.mxu0 0.0
    %1514 = vmatpush1.msra.mxu0 %v1488
    %1515 = vmatprep.subr.mxu0 0.0
    %1516 = vmatpush1.msra.mxu0 %v1489
    %1517 = vmatprep.subr.mxu0 0.0
    %1518 = vmatpush1.msra.mxu0 %v1490
    %1519 = vmatprep.subr.mxu0 0.0
    %1520 = vmatpush1.msra.mxu0 %v1491
    %1521 = vmatprep.subr.mxu0 0.0
    %1522 = vmatpush1.msra.mxu0 %v1492
    %1523 = vmatprep.subr.mxu0 0.0
    %1524 = vmatpush1.msra.mxu0 %v1493
    %1525 = vmatprep.subr.mxu0 0.0
    %1526 = vmatpush1.msra.mxu0 %v1494
    %1527 = vmatprep.subr.mxu0 0.0
    %1528 = vmatpush1.msra.mxu0 %v1495
    %1529 = vmatprep.subr.mxu0 0.0
    %1530 = vmatpush1.msra.mxu0 %v1496
    %1531 = vmatprep.subr.mxu0 0.0
    %1532 = vmatpush1.msra.mxu0 %v1497
    %1533 = vmatprep.subr.mxu0 0.0
    %1534 = vmatpush1.msra.mxu0 %v1498
    %1535 = vmatprep.subr.mxu0 0.0
    %1536 = vmatpush1.msra.mxu0 %v1499
    %1537 = vmatprep.subr.mxu0 0.0
    %1538 = vmatpush1.msra.mxu0 %v1500
    %1539 = vmatprep.subr.mxu0 0.0
    %1540 = vmatpush1.msra.mxu0 %v1501
    %1541 = vmatprep.subr.mxu0 0.0
    %1542 = vmatpush1.msra.mxu0 0.0
    %1543 = vmatprep.subr.mxu0 0.0
    %1544 = vmatpush1.msra.mxu0 0.0
    %1545 = vmatprep.subr.mxu0 0.0
    %1546 = vmatpush1.msra.mxu0 0.0
    %1547 = vmatprep.subr.mxu0 0.0
    %1548 = vmatpush1.msra.mxu0 0.0
    %1549 = vmatprep.subr.mxu0 0.0
    %1550 = vmatpush1.msra.mxu0 0.0
    %1551 = vmatprep.subr.mxu0 0.0
    %1552 = vmatpush1.msra.mxu0 0.0
    %1553 = vmatprep.subr.mxu0 0.0
    %1554 = vmatpush1.msra.mxu0 0.0
    %1555 = vmatprep.subr.mxu0 0.0
    %1556 = vmatpush1.msra.mxu0 0.0
    %1557 = vmatprep.subr.mxu0 0.0
    %1558 = vmatpush1.msra.mxu0 0.0
    %1559 = vmatprep.subr.mxu0 0.0
    %1560 = vmatpush1.msra.mxu0 0.0
    %1561 = vmatprep.subr.mxu0 0.0
    %1562 = vmatpush1.msra.mxu0 0.0
    %1563 = vmatprep.subr.mxu0 0.0
    %1564 = vmatpush1.msra.mxu0 0.0
    %1565 = vmatprep.subr.mxu0 0.0
    %1566 = vmatpush1.msra.mxu0 0.0
    %1567 = vmatprep.subr.mxu0 0.0
    %1568 = vmatpush1.msra.mxu0 0.0
    %1569 = vmatprep.subr.mxu0 0.0
    %1570 = vmatpush1.msra.mxu0 0.0
    %1571 = vmatprep.subr.mxu0 0.0
    %1572 = vmatpush1.msra.mxu0 0.0
    %1573 = vmatprep.mubr.f32.mxu0 0.0
    %1574 = vmatmul.mubr.f32.gmra.mrb[0].mxu0 %v1483
    %v1575 = vpop.f32.mrb[0].mxu0
    %v1576 = vadd.f32 %v1507, %v1575
    %v1577 = vpop.f32.mrb[0].mxu0
    %1578 = vdwg.mxu0
    %1579 = vst [vmem:[#allocation15] sm:$0xff] %v1576
    // Predicated region
    $region66: #{tpu_custom_call.1} parent=1 // pred_check
      _
    $region67: #{tpu_custom_call.1} parent=1 // pred_check_branch
      %1581 = sbr.rel (0) target = $region69
    $region68: #{tpu_custom_call.1} parent=1 // pred_region
      %s1583 = ssub.s32 128, 128
      %1584 = vsyncadd [#allocation6], %s1583
      %s1586 = sshll.u32 [#allocation15], 4
      %s1587 = int_to_ptr.vmem [resolvable:$true] %s1586
      %1589 = dma.vmem_to_hbm [thread:$0]  %s1587, 128, %s9, [#allocation6]
    $region69: #{tpu_custom_call.1} parent=1 // pred_fallthru
      _
    // Predicated region
    $region70: #{tpu_custom_call.1} parent=1 // pred_check
      _
    $region71: #{tpu_custom_call.1} parent=1 // pred_check_branch
      %1591 = sbr.rel (0) target = $region73
    $region72: #{tpu_custom_call.1} parent=1 // pred_region
      %1592 = dma.done [#allocation6], 128
    $region73: #{tpu_custom_call.1} parent=1 // pred_fallthru
      _
    %1593 = vsyncpa [#allocation5], 1
    %1594 = vsyncpa [#allocation8], 1
    %1595 = vsyncpa [#allocation11], 1
    %1596 = vsyncpa [#allocation14], 1
    %1597 = vsyncpa [#allocation6], 1

</llo_original>
